<compile_context>
chip_gen: v6e
topology: v6e:2x2x1
jax: 0.10.0
libtpu: 0.0.40
codegen_flags: <defaults>
</compile_context>

<pallas_src>
import numpy as np

import jax
import jax.numpy as jnp
from jax import lax
from jax.experimental import pallas as pl
from jax.experimental.pallas import tpu as pltpu

F32 = jnp.float32
BF16 = jnp.bfloat16

# ----------------------------------------------------------------------------
# Packed-parameter layout (host packs; kernel & reference index lazily)
# ----------------------------------------------------------------------------
# (H, H) weight stack
(I_PX1, I_PX2, I_PZ1, I_PZ2, I_ENC0X, I_ENC1,
 I_PRI1, I_DEC0Z, I_DEC1, I_DEC2) = range(10)
# (H, 3H) weight stack
I_HSEL, I_GRU_IX, I_GRU_IZ, I_GRU_HH = range(4)
# (H,)-sized bias stack
(I_BPX0, I_BPX1, I_BPX2, I_BPZ0, I_BPZ1, I_BPZ2,
 I_BENC1, I_BPRI1, I_BDEC1, I_BDEC2) = range(10)
# (3H,)-sized bias stack
I_BHSEL, I_BGRUI, I_BGRUH = range(3)
# (H, Z) weight stack / (Z,)-sized bias stack
I_ENC2, I_PRI2 = range(2)


# ----------------------------------------------------------------------------
# Shared math — used identically inside the Pallas kernel and the pure-JAX
# reference.  The dict `P` holds either VMEM Refs (kernel) or jnp arrays
# (reference); both support [...] / [i] / [i:i+1, :] indexing so every weight
# is read right at its use site.
# ----------------------------------------------------------------------------
def _dot(a, w):
    # bf16 operands, f32 accumulation: one MXU pass (no HIGHEST multi-pass).
    return jnp.dot(a.astype(BF16), w.astype(BF16), preferred_element_type=F32)


def _elu(x):
    # exp only evaluated on the non-positive side (avoids spurious overflow).
    return jnp.where(x > 0, x, jnp.exp(jnp.minimum(x, 0.0)) - 1.0)


def _sigmoid(x):
    return 1.0 / (1.0 + jnp.exp(-x))


def _round(x):
    # round-half-up; matches torch.round everywhere except exact .5 ties.
    return jnp.floor(x + 0.5)


def _row(p, i):
    return p[i:i + 1, :]


def _phi_x(x, P):
    h = _elu(_dot(x, P['w_px0'][...]) + _row(P['b_h'], I_BPX0))
    h = _elu(_dot(h, P['w_hh'][I_PX1]) + _row(P['b_h'], I_BPX1))
    h = _elu(_dot(h, P['w_hh'][I_PX2]) + _row(P['b_h'], I_BPX2))
    return h


def _phi_z(z, P):
    h = _elu(_dot(z, P['w_pz0'][...]) + _row(P['b_h'], I_BPZ0))
    h = _elu(_dot(h, P['w_hh'][I_PZ1]) + _row(P['b_h'], I_BPZ1))
    h = _elu(_dot(h, P['w_hh'][I_PZ2]) + _row(P['b_h'], I_BPZ2))
    return h


def _gru(gi, h, P, H):
    # gi: fused input-side pre-activation (B, 3H), including the input bias.
    gh = _dot(h, P['w_h3h'][I_GRU_HH]) + _row(P['b_3h'], I_BGRUH)
    r = _sigmoid(gi[:, 0:H] + gh[:, 0:H])
    z = _sigmoid(gi[:, H:2 * H] + gh[:, H:2 * H])
    n = jnp.tanh(gi[:, 2 * H:3 * H] + r * gh[:, 2 * H:3 * H])
    return (1.0 - z) * n + z * h


def _kld_elem(enc, prior):
    lo = 0.001
    return (enc * (jnp.log(jnp.maximum(enc, lo)) - jnp.log(jnp.maximum(prior, lo)))
            + (1.0 - enc) * (jnp.log(jnp.maximum(1.0 - enc, lo))
                             - jnp.log(jnp.maximum(1.0 - prior, lo))))


def _step(y_t, noise_t, use_gen, h_prev, h2_prev, P, *, H, B, greedy, p_use_gen):
    """One BVRNN frame (exact forward() semantics, variableBit=False)."""
    mean = P['mean'][...]
    std = P['std'][...]
    phi_x_t = _phi_x((y_t - mean) / std, P)

    if isinstance(use_gen, bool):                       # static p in {0, 1}
        h_sel = h2_prev if use_gen else h_prev
    else:                                               # (1, 1) float 0/1 mask
        h_sel = use_gen * h2_prev + (1.0 - use_gen) * h_prev

    # fused h_sel projections: [enc0 h-half | prior0 | dec0 h-half] -> (B, 3H)
    hsel_p = _dot(h_sel, P['w_h3h'][I_HSEL]) + _row(P['b_3h'], I_BHSEL)
    enc0_h = hsel_p[:, 0:H]
    pri0 = hsel_p[:, H:2 * H]
    dec0_h = hsel_p[:, 2 * H:3 * H]

    # encoder
    e = _elu(_dot(phi_x_t, P['w_hh'][I_ENC0X]) + enc0_h)
    e = _elu(_dot(e, P['w_hh'][I_ENC1]) + _row(P['b_h'], I_BENC1))
    enc_t = _sigmoid(_dot(e, P['w_z_out'][I_ENC2]) + _row(P['b_z_out'], I_ENC2))

    # prior
    p = _elu(pri0)
    p = _elu(_dot(p, P['w_hh'][I_PRI1]) + _row(P['b_h'], I_BPRI1))
    prior_t = _sigmoid(_dot(p, P['w_z_out'][I_PRI2]) + _row(P['b_z_out'], I_PRI2))

    # binary latent (forward value of the straight-through estimator)
    if greedy:
        z_t = _round(enc_t)
    else:
        z_t = _round(noise_t - 0.5 + enc_t)

    phi_z_t = _phi_z(z_t, P)

    # decoder
    d = _elu(_dot(phi_z_t, P['w_hh'][I_DEC0Z]) + dec0_h)
    d = _elu(_dot(d, P['w_hh'][I_DEC1]) + _row(P['b_h'], I_BDEC1))
    d = _elu(_dot(d, P['w_hh'][I_DEC2]) + _row(P['b_h'], I_BDEC2))
    dec_t = _dot(d, P['w_dec_out'][...]) + P['b_dec_out'][...]

    # GRU updates (fused r/z/n gates; phi_z input projection shared)
    gi_z = _dot(phi_z_t, P['w_h3h'][I_GRU_IZ]) + _row(P['b_3h'], I_BGRUI)
    h_new, h2_new = h_prev, h2_prev
    if p_use_gen < 1.0:
        h_new = _gru(_dot(phi_x_t, P['w_h3h'][I_GRU_IX]) + gi_z, h_prev, P, H)
    if p_use_gen > 0.0:
        phi_x_gen = _phi_x((dec_t - mean) / std, P)
        h2_new = _gru(_dot(phi_x_gen, P['w_h3h'][I_GRU_IX]) + gi_z, h2_prev, P, H)

    # mean over batch of sum over z, kept as (1, 1)
    kld = jnp.sum(jnp.sum(_kld_elem(enc_t, prior_t), axis=1, keepdims=True),
                  axis=0, keepdims=True) * (1.0 / B)
    return dec_t, h_new, h2_new, kld


# ----------------------------------------------------------------------------
# Pallas kernel: one grid step processes a whole chunk of frames.
# ----------------------------------------------------------------------------
def _make_kernel(*, T, T_chunk, num_chunks, B, X, H, Z, p_use_gen, greedy):
    has_pad = (T_chunk * num_chunks != T)
    dynamic_use_gen = (0.0 < p_use_gen < 1.0)

    def kernel(y_ref, ug_ref, noise_ref,
               w_px0, w_pz0, w_hh, w_h3h, b_h, b_3h,
               w_z_out, b_z_out, w_dec_out, b_dec_out, mean_ref, std_ref,
               dec_ref, kld_ref, h_sc, h2_sc):
        c = pl.program_id(0)

        @pl.when(c == 0)
        def _init():
            h_sc[...] = jnp.zeros_like(h_sc)
            h2_sc[...] = jnp.zeros_like(h2_sc)
            kld_ref[...] = jnp.zeros_like(kld_ref)

        P = dict(w_px0=w_px0, w_pz0=w_pz0, w_hh=w_hh, w_h3h=w_h3h,
                 b_h=b_h, b_3h=b_3h, w_z_out=w_z_out, b_z_out=b_z_out,
                 w_dec_out=w_dec_out, b_dec_out=b_dec_out,
                 mean=mean_ref, std=std_ref)

        def body(t_local, carry):
            h, h2, kld_acc = carry
            y_t = y_ref[t_local]                                  # (B, X)
            noise_t = None if greedy else noise_ref[t_local]      # (B, Z)
            if dynamic_use_gen:
                use_gen = ug_ref[pl.ds(t_local, 1), :]            # (1, 1) 0/1
            else:
                use_gen = bool(p_use_gen >= 1.0)                  # static

            dec_t, h_new, h2_new, kld_t = _step(
                y_t, noise_t, use_gen, h, h2, P,
                H=H, B=B, greedy=greedy, p_use_gen=p_use_gen)

            dec_ref[t_local] = dec_t.astype(dec_ref.dtype)

            if has_pad:
                valid = (c * T_chunk + t_local) < T
                h = jnp.where(valid, h_new, h)
                h2 = jnp.where(valid, h2_new, h2)
                kld_acc = kld_acc + jnp.where(valid, kld_t, 0.0)
            else:
                h, h2 = h_new, h2_new
                kld_acc = kld_acc + kld_t
            return h, h2, kld_acc

        h, h2, kld_chunk = lax.fori_loop(
            0, T_chunk, body,
            (h_sc[...], h2_sc[...], jnp.zeros((1, 1), F32)))

        h_sc[...] = h
        h2_sc[...] = h2
        kld_ref[...] = kld_ref[...] + kld_chunk

        @pl.when(c == num_chunks - 1)
        def _fin():
            kld_ref[...] = kld_ref[...] * (1.0 / T)

    return kernel


def bvrnn_forward(y_btx, packed, p_use_gen, greedy=True, rng=None):
    """BVRNN forward. Returns (dec (B,T,X) f32, kld scalar f32)."""
    p_use_gen = float(p_use_gen)
    greedy = bool(greedy)
    B, T, X = y_btx.shape
    H = packed['w_hh'].shape[1]
    Z = packed['w_z_out'].shape[2]

    MAX_CHUNK = 512                         # frames per grid step (multiple of 8)
    if T <= MAX_CHUNK:
        T_chunk, num_chunks = T, 1
    else:
        T_chunk = MAX_CHUNK
        num_chunks = -(-T // T_chunk)
    T_pad = T_chunk * num_chunks

    # TODO(synk): for very long sequences fold this transpose into the kernel
    # (batch-major BlockSpec) to save one HBM pass.
    y_tbx = jnp.transpose(y_btx, (1, 0, 2)).astype(F32)
    if T_pad != T:
        y_tbx = jnp.pad(y_tbx, ((0, T_pad - T), (0, 0), (0, 0)))

    # Host-side randomness (replaces torch.rand; no in-kernel PRNG).
    if rng is None:
        rng = jax.random.PRNGKey(1234)
    k_ug, k_noise = jax.random.split(rng)
    if 0.0 < p_use_gen < 1.0:
        ug = (jax.random.uniform(k_ug, (T_pad, 1)) < p_use_gen).astype(F32)
    else:
        ug = jnp.zeros((T_pad, 1), F32)
    if greedy:
        noise = jnp.zeros((T_pad, B, Z), F32)
    else:
        noise = jax.random.uniform(k_noise, (T_pad, B, Z), dtype=F32)

    kernel = _make_kernel(T=T, T_chunk=T_chunk, num_chunks=num_chunks,
                          B=B, X=X, H=H, Z=Z,
                          p_use_gen=p_use_gen, greedy=greedy)

    def full_spec(arr):
        nd = arr.ndim
        return pl.BlockSpec(arr.shape, lambda c: (0,) * nd)

    weight_names = ['w_px0', 'w_pz0', 'w_hh', 'w_h3h', 'b_h', 'b_3h',
                    'w_z_out', 'b_z_out', 'w_dec_out', 'b_dec_out',
                    'mean', 'std']
    weight_args = [packed[k] for k in weight_names]

    in_specs = ([pl.BlockSpec((T_chunk, B, X), lambda c: (c, 0, 0)),   # y
                 pl.BlockSpec((T_chunk, 1), lambda c: (c, 0)),         # use_gen
                 pl.BlockSpec((T_chunk, B, Z), lambda c: (c, 0, 0))]   # noise
                + [full_spec(a) for a in weight_args])
    out_specs = [pl.BlockSpec((T_chunk, B, X), lambda c: (c, 0, 0)),   # dec chunk
                 pl.BlockSpec((1, 1), lambda c: (0, 0))]               # kld acc

    grid_spec = pltpu.PrefetchScalarGridSpec(
        num_scalar_prefetch=0,
        grid=(num_chunks,),
        in_specs=in_specs,
        out_specs=out_specs,
        scratch_shapes=[pltpu.VMEM((B, H), F32),    # h  (carried across chunks)
                        pltpu.VMEM((B, H), F32)])   # h2

    dec_tbx, kld = pl.pallas_call(
        kernel,
        out_shape=(jax.ShapeDtypeStruct((T_pad, B, X), F32),
                   jax.ShapeDtypeStruct((1, 1), F32)),
        grid_spec=grid_spec,
        compiler_params=pltpu.CompilerParams(
            dimension_semantics=("arbitrary",)),     # sequential recurrence
    )(y_tbx, ug, noise, *weight_args)

    return jnp.transpose(dec_tbx[:T], (1, 0, 2)), kld[0, 0]


# ----------------------------------------------------------------------------
# Pure-JAX reference (same math, plain Python loop)
# ----------------------------------------------------------------------------
def ref_forward(y_btx, packed, p_use_gen, greedy=True, ug_flags=None, noise=None):
    p_use_gen = float(p_use_gen)
    B, T, X = y_btx.shape
    H = packed['w_hh'].shape[1]
    h = jnp.zeros((B, H), F32)
    h2 = jnp.zeros((B, H), F32)
    decs, klds = [], []
    for t in range(T):
        if p_use_gen <= 0.0:
            use_gen = False
        elif p_use_gen >= 1.0:
            use_gen = True
        else:
            use_gen = bool(ug_flags[t])
        noise_t = None if greedy else noise[t]
        dec_t, h, h2, kld = _step(y_btx[:, t, :], noise_t, use_gen, h, h2,
                                  packed, H=H, B=B, greedy=greedy,
                                  p_use_gen=p_use_gen)
        decs.append(dec_t)
        klds.append(kld[0, 0])
    return jnp.stack(decs, axis=1), jnp.mean(jnp.stack(klds))


# ----------------------------------------------------------------------------
# Deterministic parameter init (shapes follow BVRNN.__init__) + host packing
# ----------------------------------------------------------------------------
def init_packed_params(key, X, H, Z):
    keys = iter(jax.random.split(key, 64))

    def lin(fi, fo):
        b = 1.0 / np.sqrt(fi)
        w = jax.random.uniform(next(keys), (fi, fo), F32, -b, b)
        bb = jax.random.uniform(next(keys), (1, fo), F32, -b, b)
        return w, bb

    px0_w, px0_b = lin(X, H); px1_w, px1_b = lin(H, H); px2_w, px2_b = lin(H, H)
    pz0_w, pz0_b = lin(Z, H); pz1_w, pz1_b = lin(H, H); pz2_w, pz2_b = lin(H, H)
    enc0_w, enc0_b = lin(2 * H, H); enc1_w, enc1_b = lin(H, H); enc2_w, enc2_b = lin(H, Z)
    pri0_w, pri0_b = lin(H, H); pri1_w, pri1_b = lin(H, H); pri2_w, pri2_b = lin(H, Z)
    dec0_w, dec0_b = lin(2 * H, H); dec1_w, dec1_b = lin(H, H)
    dec2_w, dec2_b = lin(H, H); dec3_w, dec3_b = lin(H, X)

    # GRU: input (2H -> 3H, gate columns [r|z|n]), hidden (H -> 3H), biases.
    bg = 1.0 / np.sqrt(H)
    w_ih = jax.random.uniform(next(keys), (2 * H, 3 * H), F32, -bg, bg)
    w_hh_g = jax.random.uniform(next(keys), (H, 3 * H), F32, -bg, bg)
    b_i = jax.random.uniform(next(keys), (1, 3 * H), F32, -bg, bg)
    b_hg = jax.random.uniform(next(keys), (1, 3 * H), F32, -bg, bg)

    w_hh = jnp.stack([px1_w, px2_w, pz1_w, pz2_w, enc0_w[:H], enc1_w,
                      pri1_w, dec0_w[:H], dec1_w, dec2_w], axis=0)
    w_h3h = jnp.stack([jnp.concatenate([enc0_w[H:], pri0_w, dec0_w[H:]], axis=1),
                       w_ih[:H], w_ih[H:], w_hh_g], axis=0)
    b_h = jnp.concatenate([px0_b, px1_b, px2_b, pz0_b, pz1_b, pz2_b,
                           enc1_b, pri1_b, dec1_b, dec2_b], axis=0)
    b_3h = jnp.concatenate(
        [jnp.concatenate([enc0_b, pri0_b, dec0_b], axis=1), b_i, b_hg], axis=0)
    w_z_out = jnp.stack([enc2_w, pri2_w], axis=0)
    b_z_out = jnp.concatenate([enc2_b, pri2_b], axis=0)

    return dict(
        w_px0=px0_w.astype(BF16), w_pz0=pz0_w.astype(BF16),
        w_hh=w_hh.astype(BF16), w_h3h=w_h3h.astype(BF16),
        b_h=b_h, b_3h=b_3h,
        w_z_out=w_z_out.astype(BF16), b_z_out=b_z_out,
        w_dec_out=dec3_w.astype(BF16), b_dec_out=dec3_b)


if __name__ == "__main__":
    B, T, X, H, Z = 4, 8, 24, 32, 16

    key = jax.random.PRNGKey(0)
    k_par, k_mean, k_std, k_y = jax.random.split(key, 4)

    packed = init_packed_params(k_par, X, H, Z)
    packed['mean'] = jax.random.normal(k_mean, (1, X), F32) * 0.5
    packed['std'] = jax.random.uniform(k_std, (1, X), F32, 0.5, 1.5)
    y = jax.random.normal(k_y, (B, T, X), F32)

    # Deterministic checks: for p_use_gen in {0, 1} the per-step random branch
    # is a constant, so the kernel output must match the pure-JAX reference.
    for p_use_gen in (0.0, 1.0):
        dec, kld = bvrnn_forward(y, packed, p_use_gen, greedy=True)
        jax.block_until_ready((dec, kld))
        dec_r, kld_r = ref_forward(y, packed, p_use_gen, greedy=True)
        np.testing.assert_allclose(np.asarray(dec), np.asarray(dec_r),
                                   atol=2e-3, rtol=2e-3)
        np.testing.assert_allclose(np.asarray(kld), np.asarray(kld_r),
                                   atol=2e-3, rtol=2e-3)

    # Exercise the stochastic scheduled-sampling path and non-greedy sampling
    # (host-side jax.random draws; torch RNG stream not reproducible).
    dec_mix, kld_mix = bvrnn_forward(y, packed, 0.5, greedy=False,
                                     rng=jax.random.PRNGKey(7))
    jax.block_until_ready((dec_mix, kld_mix))

    print("KERNEL_OK")
</pallas_src>

<mosaic_0001>
module attributes {stable_mosaic.version = 11 : i64} {
  func.func @kernel(%arg0: i32, %arg1: memref<8x4x24xf32, #tpu.memory_space<vmem>>, %arg2: memref<8x1xf32, #tpu.memory_space<vmem>>, %arg3: memref<8x4x16xf32, #tpu.memory_space<vmem>>, %arg4: memref<24x32xbf16, #tpu.memory_space<vmem>>, %arg5: memref<16x32xbf16, #tpu.memory_space<vmem>>, %arg6: memref<10x32x32xbf16, #tpu.memory_space<vmem>>, %arg7: memref<4x32x96xbf16, #tpu.memory_space<vmem>>, %arg8: memref<10x32xf32, #tpu.memory_space<vmem>>, %arg9: memref<3x96xf32, #tpu.memory_space<vmem>>, %arg10: memref<2x32x16xbf16, #tpu.memory_space<vmem>>, %arg11: memref<2x16xf32, #tpu.memory_space<vmem>>, %arg12: memref<32x24xbf16, #tpu.memory_space<vmem>>, %arg13: memref<1x24xf32, #tpu.memory_space<vmem>>, %arg14: memref<1x24xf32, #tpu.memory_space<vmem>>, %arg15: memref<1x24xf32, #tpu.memory_space<vmem>>, %arg16: memref<8x4x24xf32, #tpu.memory_space<vmem>>, %arg17: memref<1x1xf32, #tpu.memory_space<vmem>>, %arg18: memref<4x32xf32, #tpu.memory_space<vmem>>, %arg19: memref<4x32xf32, #tpu.memory_space<vmem>>) attributes {dimension_semantics = [#tpu.dimension_semantics<arbitrary>], iteration_bounds = array<i64: 1>, scalar_prefetch = 0 : i64, scratch_operands = 2 : i64, tpu.core_type = #tpu.core_type<tc>, window_params = [{transform_indices = @transform_0, window_bounds = array<i64: 8, 4, 24>}, {transform_indices = @transform_1, window_bounds = array<i64: 8, 1>}, {transform_indices = @transform_2, window_bounds = array<i64: 8, 4, 16>}, {pipeline_mode = #tpu.pipeline_mode<synchronous>, transform_indices = @transform_3, window_bounds = array<i64: 24, 32>}, {pipeline_mode = #tpu.pipeline_mode<synchronous>, transform_indices = @transform_4, window_bounds = array<i64: 16, 32>}, {pipeline_mode = #tpu.pipeline_mode<synchronous>, transform_indices = @transform_5, window_bounds = array<i64: 10, 32, 32>}, {pipeline_mode = #tpu.pipeline_mode<synchronous>, transform_indices = @transform_6, window_bounds = array<i64: 4, 32, 96>}, {pipeline_mode = #tpu.pipeline_mode<synchronous>, transform_indices = @transform_7, window_bounds = array<i64: 10, 32>}, {pipeline_mode = #tpu.pipeline_mode<synchronous>, transform_indices = @transform_8, window_bounds = array<i64: 3, 96>}, {pipeline_mode = #tpu.pipeline_mode<synchronous>, transform_indices = @transform_9, window_bounds = array<i64: 2, 32, 16>}, {pipeline_mode = #tpu.pipeline_mode<synchronous>, transform_indices = @transform_10, window_bounds = array<i64: 2, 16>}, {pipeline_mode = #tpu.pipeline_mode<synchronous>, transform_indices = @transform_11, window_bounds = array<i64: 32, 24>}, {pipeline_mode = #tpu.pipeline_mode<synchronous>, transform_indices = @transform_12, window_bounds = array<i64: 1, 24>}, {pipeline_mode = #tpu.pipeline_mode<synchronous>, transform_indices = @transform_13, window_bounds = array<i64: 1, 24>}, {pipeline_mode = #tpu.pipeline_mode<synchronous>, transform_indices = @transform_14, window_bounds = array<i64: 1, 24>}, {transform_indices = @transform_15, window_bounds = array<i64: 8, 4, 24>}, {pipeline_mode = #tpu.pipeline_mode<synchronous>, transform_indices = @transform_16, window_bounds = array<i64: 1, 1>}]} {
    %c0_i32 = arith.constant 0 : i32
    %0 = arith.cmpi eq, %arg0, %c0_i32 : i32
    %1 = arith.extui %0 : i1 to i32
    %c0_i32_0 = arith.constant 0 : i32
    %2 = arith.cmpi ne, %1, %c0_i32_0 : i32
    scf.if %2 {
      %cst_16 = arith.constant 0.000000e+00 : f32
      %16 = vector.broadcast %cst_16 : f32 to vector<4x32xf32>
      %c0_17 = arith.constant 0 : index
      %c0_18 = arith.constant 0 : index
      %17 = vector.load %arg18[%c0_17, %c0_18] : memref<4x32xf32, #tpu.memory_space<vmem>>, vector<4x32xf32>
      tpu.vector_store %arg18[%c0_17, %c0_18], %16 {strides = array<i32>} : memref<4x32xf32, #tpu.memory_space<vmem>>, vector<4x32xf32>,
      %cst_19 = arith.constant 0.000000e+00 : f32
      %18 = vector.broadcast %cst_19 : f32 to vector<4x32xf32>
      %c0_20 = arith.constant 0 : index
      %c0_21 = arith.constant 0 : index
      %19 = vector.load %arg19[%c0_20, %c0_21] : memref<4x32xf32, #tpu.memory_space<vmem>>, vector<4x32xf32>
      tpu.vector_store %arg19[%c0_20, %c0_21], %18 {strides = array<i32>} : memref<4x32xf32, #tpu.memory_space<vmem>>, vector<4x32xf32>,
      %cst_22 = arith.constant 0.000000e+00 : f32
      %20 = vector.broadcast %cst_22 : f32 to vector<1x1xf32>
      %c0_23 = arith.constant 0 : index
      %c0_24 = arith.constant 0 : index
      %21 = vector.load %arg17[%c0_23, %c0_24] : memref<1x1xf32, #tpu.memory_space<vmem>>, vector<1x1xf32>
      tpu.vector_store %arg17[%c0_23, %c0_24], %20 {strides = array<i32>} : memref<1x1xf32, #tpu.memory_space<vmem>>, vector<1x1xf32>,
    } else {
    }
    %c0 = arith.constant 0 : index
    %c0_1 = arith.constant 0 : index
    %3 = vector.load %arg18[%c0, %c0_1] : memref<4x32xf32, #tpu.memory_space<vmem>>, vector<4x32xf32>
    %c0_2 = arith.constant 0 : index
    %c0_3 = arith.constant 0 : index
    %4 = vector.load %arg19[%c0_2, %c0_3] : memref<4x32xf32, #tpu.memory_space<vmem>>, vector<4x32xf32>
    %cst = arith.constant 0.000000e+00 : f32
    %5 = vector.broadcast %cst : f32 to vector<1x1xf32>
    %c0_i32_4 = arith.constant 0 : i32
    %c8_i32 = arith.constant 8 : i32
    %6 = arith.addi %c0_i32_4, %c8_i32 : i32
    %c1_i32 = arith.constant 1 : i32
    %7:2 = scf.for %arg20 = %c0_i32_4 to %6 step %c1_i32 iter_args(%arg21 = %3, %arg22 = %5) -> (vector<4x32xf32>, vector<1x1xf32>)  : i32 {
      %16 = arith.index_cast %arg20 : i32 to index
      %c0_16 = arith.constant 0 : index
      %c0_17 = arith.constant 0 : index
      %17 = vector.load %arg1[%16, %c0_16, %c0_17] : memref<8x4x24xf32, #tpu.memory_space<vmem>>, vector<1x4x24xf32>
      %18 = vector.shape_cast %17 : vector<1x4x24xf32> to vector<4x24xf32>
      %c0_18 = arith.constant 0 : index
      %c0_19 = arith.constant 0 : index
      %19 = vector.load %arg14[%c0_18, %c0_19] : memref<1x24xf32, #tpu.memory_space<vmem>>, vector<1x24xf32>
      %c0_20 = arith.constant 0 : index
      %c0_21 = arith.constant 0 : index
      %20 = vector.load %arg15[%c0_20, %c0_21] : memref<1x24xf32, #tpu.memory_space<vmem>>, vector<1x24xf32>
      %21 = vector.broadcast %19 : vector<1x24xf32> to vector<4x24xf32>
      %22 = arith.subf %18, %21 : vector<4x24xf32>
      %23 = vector.broadcast %20 : vector<1x24xf32> to vector<4x24xf32>
      %24 = arith.divf %22, %23 : vector<4x24xf32>
      %c0_22 = arith.constant 0 : index
      %c0_23 = arith.constant 0 : index
      %25 = vector.load %arg4[%c0_22, %c0_23] : memref<24x32xbf16, #tpu.memory_space<vmem>>, vector<24x32xbf16>
      %26 = arith.truncf %24 : vector<4x24xf32> to vector<4x24xbf16>
      %cst_24 = arith.constant dense<0.000000e+00> : vector<4x32xf32>
      %27 = tpu.matmul %26, %25, %cst_24 {dimension_numbers = #tpu.dot_dimension_numbers<[1], [0], [0], [1], [0, 0, 1, 1], [], []>} : vector<4x24xbf16>, vector<24x32xbf16>, vector<4x32xf32> -> vector<4x32xf32>
      %c0_25 = arith.constant 0 : index
      %c0_26 = arith.constant 0 : index
      %28 = vector.load %arg8[%c0_25, %c0_26] : memref<10x32xf32, #tpu.memory_space<vmem>>, vector<1x32xf32>
      %29 = vector.broadcast %28 : vector<1x32xf32> to vector<4x32xf32>
      %30 = arith.addf %27, %29 : vector<4x32xf32>
      %cst_27 = arith.constant 0.000000e+00 : f32
      %31 = vector.broadcast %cst_27 : f32 to vector<4x32xf32>
      %32 = arith.cmpf ogt, %30, %31 : vector<4x32xf32>
      %cst_28 = arith.constant 0.000000e+00 : f32
      %33 = vector.broadcast %cst_28 : f32 to vector<4x32xf32>
      %34 = arith.minimumf %30, %33 : vector<4x32xf32>
      %35 = math.exp %34 : vector<4x32xf32>
      %cst_29 = arith.constant 1.000000e+00 : f32
      %36 = vector.broadcast %cst_29 : f32 to vector<4x32xf32>
      %37 = arith.subf %35, %36 : vector<4x32xf32>
      %38 = arith.select %32, %30, %37 : vector<4x32xi1>, vector<4x32xf32>
      %c0_30 = arith.constant 0 : index
      %c0_31 = arith.constant 0 : index
      %c0_32 = arith.constant 0 : index
      %39 = vector.load %arg6[%c0_30, %c0_31, %c0_32] : memref<10x32x32xbf16, #tpu.memory_space<vmem>>, vector<1x32x32xbf16>
      %40 = vector.shape_cast %39 : vector<1x32x32xbf16> to vector<32x32xbf16>
      %41 = arith.truncf %38 : vector<4x32xf32> to vector<4x32xbf16>
      %cst_33 = arith.constant dense<0.000000e+00> : vector<4x32xf32>
      %42 = tpu.matmul %41, %40, %cst_33 {dimension_numbers = #tpu.dot_dimension_numbers<[1], [0], [0], [1], [0, 0, 1, 1], [], []>} : vector<4x32xbf16>, vector<32x32xbf16>, vector<4x32xf32> -> vector<4x32xf32>
      %c1 = arith.constant 1 : index
      %c0_34 = arith.constant 0 : index
      %43 = vector.load %arg8[%c1, %c0_34] : memref<10x32xf32, #tpu.memory_space<vmem>>, vector<1x32xf32>
      %44 = vector.broadcast %43 : vector<1x32xf32> to vector<4x32xf32>
      %45 = arith.addf %42, %44 : vector<4x32xf32>
      %cst_35 = arith.constant 0.000000e+00 : f32
      %46 = vector.broadcast %cst_35 : f32 to vector<4x32xf32>
      %47 = arith.cmpf ogt, %45, %46 : vector<4x32xf32>
      %cst_36 = arith.constant 0.000000e+00 : f32
      %48 = vector.broadcast %cst_36 : f32 to vector<4x32xf32>
      %49 = arith.minimumf %45, %48 : vector<4x32xf32>
      %50 = math.exp %49 : vector<4x32xf32>
      %cst_37 = arith.constant 1.000000e+00 : f32
      %51 = vector.broadcast %cst_37 : f32 to vector<4x32xf32>
      %52 = arith.subf %50, %51 : vector<4x32xf32>
      %53 = arith.select %47, %45, %52 : vector<4x32xi1>, vector<4x32xf32>
      %c1_38 = arith.constant 1 : index
      %c0_39 = arith.constant 0 : index
      %c0_40 = arith.constant 0 : index
      %54 = vector.load %arg6[%c1_38, %c0_39, %c0_40] : memref<10x32x32xbf16, #tpu.memory_space<vmem>>, vector<1x32x32xbf16>
      %55 = vector.shape_cast %54 : vector<1x32x32xbf16> to vector<32x32xbf16>
      %56 = arith.truncf %53 : vector<4x32xf32> to vector<4x32xbf16>
      %cst_41 = arith.constant dense<0.000000e+00> : vector<4x32xf32>
      %57 = tpu.matmul %56, %55, %cst_41 {dimension_numbers = #tpu.dot_dimension_numbers<[1], [0], [0], [1], [0, 0, 1, 1], [], []>} : vector<4x32xbf16>, vector<32x32xbf16>, vector<4x32xf32> -> vector<4x32xf32>
      %c2 = arith.constant 2 : index
      %c0_42 = arith.constant 0 : index
      %58 = vector.load %arg8[%c2, %c0_42] : memref<10x32xf32, #tpu.memory_space<vmem>>, vector<1x32xf32>
      %59 = vector.broadcast %58 : vector<1x32xf32> to vector<4x32xf32>
      %60 = arith.addf %57, %59 : vector<4x32xf32>
      %cst_43 = arith.constant 0.000000e+00 : f32
      %61 = vector.broadcast %cst_43 : f32 to vector<4x32xf32>
      %62 = arith.cmpf ogt, %60, %61 : vector<4x32xf32>
      %cst_44 = arith.constant 0.000000e+00 : f32
      %63 = vector.broadcast %cst_44 : f32 to vector<4x32xf32>
      %64 = arith.minimumf %60, %63 : vector<4x32xf32>
      %65 = math.exp %64 : vector<4x32xf32>
      %cst_45 = arith.constant 1.000000e+00 : f32
      %66 = vector.broadcast %cst_45 : f32 to vector<4x32xf32>
      %67 = arith.subf %65, %66 : vector<4x32xf32>
      %68 = arith.select %62, %60, %67 : vector<4x32xi1>, vector<4x32xf32>
      %c0_46 = arith.constant 0 : index
      %c0_47 = arith.constant 0 : index
      %c0_48 = arith.constant 0 : index
      %69 = vector.load %arg7[%c0_46, %c0_47, %c0_48] : memref<4x32x96xbf16, #tpu.memory_space<vmem>>, vector<1x32x96xbf16>
      %70 = vector.shape_cast %69 : vector<1x32x96xbf16> to vector<32x96xbf16>
      %71 = arith.truncf %arg21 : vector<4x32xf32> to vector<4x32xbf16>
      %cst_49 = arith.constant dense<0.000000e+00> : vector<4x96xf32>
      %72 = tpu.matmul %71, %70, %cst_49 {dimension_numbers = #tpu.dot_dimension_numbers<[1], [0], [0], [1], [0, 0, 1, 1], [], []>} : vector<4x32xbf16>, vector<32x96xbf16>, vector<4x96xf32> -> vector<4x96xf32>
      %c0_50 = arith.constant 0 : index
      %c0_51 = arith.constant 0 : index
      %73 = vector.load %arg9[%c0_50, %c0_51] : memref<3x96xf32, #tpu.memory_space<vmem>>, vector<1x96xf32>
      %74 = vector.broadcast %73 : vector<1x96xf32> to vector<4x96xf32>
      %75 = arith.addf %72, %74 : vector<4x96xf32>
      %76 = vector.extract_strided_slice %75 {offsets = [0, 0], sizes = [4, 32], strides = [1, 1]} : vector<4x96xf32> to vector<4x32xf32>
      %77 = vector.extract_strided_slice %75 {offsets = [0, 32], sizes = [4, 32], strides = [1, 1]} : vector<4x96xf32> to vector<4x32xf32>
      %78 = vector.extract_strided_slice %75 {offsets = [0, 64], sizes = [4, 32], strides = [1, 1]} : vector<4x96xf32> to vector<4x32xf32>
      %c4 = arith.constant 4 : index
      %c0_52 = arith.constant 0 : index
      %c0_53 = arith.constant 0 : index
      %79 = vector.load %arg6[%c4, %c0_52, %c0_53] : memref<10x32x32xbf16, #tpu.memory_space<vmem>>, vector<1x32x32xbf16>
      %80 = vector.shape_cast %79 : vector<1x32x32xbf16> to vector<32x32xbf16>
      %81 = arith.truncf %68 : vector<4x32xf32> to vector<4x32xbf16>
      %cst_54 = arith.constant dense<0.000000e+00> : vector<4x32xf32>
      %82 = tpu.matmul %81, %80, %cst_54 {dimension_numbers = #tpu.dot_dimension_numbers<[1], [0], [0], [1], [0, 0, 1, 1], [], []>} : vector<4x32xbf16>, vector<32x32xbf16>, vector<4x32xf32> -> vector<4x32xf32>
      %83 = arith.addf %82, %76 : vector<4x32xf32>
      %cst_55 = arith.constant 0.000000e+00 : f32
      %84 = vector.broadcast %cst_55 : f32 to vector<4x32xf32>
      %85 = arith.cmpf ogt, %83, %84 : vector<4x32xf32>
      %cst_56 = arith.constant 0.000000e+00 : f32
      %86 = vector.broadcast %cst_56 : f32 to vector<4x32xf32>
      %87 = arith.minimumf %83, %86 : vector<4x32xf32>
      %88 = math.exp %87 : vector<4x32xf32>
      %cst_57 = arith.constant 1.000000e+00 : f32
      %89 = vector.broadcast %cst_57 : f32 to vector<4x32xf32>
      %90 = arith.subf %88, %89 : vector<4x32xf32>
      %91 = arith.select %85, %83, %90 : vector<4x32xi1>, vector<4x32xf32>
      %c5 = arith.constant 5 : index
      %c0_58 = arith.constant 0 : index
      %c0_59 = arith.constant 0 : index
      %92 = vector.load %arg6[%c5, %c0_58, %c0_59] : memref<10x32x32xbf16, #tpu.memory_space<vmem>>, vector<1x32x32xbf16>
      %93 = vector.shape_cast %92 : vector<1x32x32xbf16> to vector<32x32xbf16>
      %94 = arith.truncf %91 : vector<4x32xf32> to vector<4x32xbf16>
      %cst_60 = arith.constant dense<0.000000e+00> : vector<4x32xf32>
      %95 = tpu.matmul %94, %93, %cst_60 {dimension_numbers = #tpu.dot_dimension_numbers<[1], [0], [0], [1], [0, 0, 1, 1], [], []>} : vector<4x32xbf16>, vector<32x32xbf16>, vector<4x32xf32> -> vector<4x32xf32>
      %c6 = arith.constant 6 : index
      %c0_61 = arith.constant 0 : index
      %96 = vector.load %arg8[%c6, %c0_61] : memref<10x32xf32, #tpu.memory_space<vmem>>, vector<1x32xf32>
      %97 = vector.broadcast %96 : vector<1x32xf32> to vector<4x32xf32>
      %98 = arith.addf %95, %97 : vector<4x32xf32>
      %cst_62 = arith.constant 0.000000e+00 : f32
      %99 = vector.broadcast %cst_62 : f32 to vector<4x32xf32>
      %100 = arith.cmpf ogt, %98, %99 : vector<4x32xf32>
      %cst_63 = arith.constant 0.000000e+00 : f32
      %101 = vector.broadcast %cst_63 : f32 to vector<4x32xf32>
      %102 = arith.minimumf %98, %101 : vector<4x32xf32>
      %103 = math.exp %102 : vector<4x32xf32>
      %cst_64 = arith.constant 1.000000e+00 : f32
      %104 = vector.broadcast %cst_64 : f32 to vector<4x32xf32>
      %105 = arith.subf %103, %104 : vector<4x32xf32>
      %106 = arith.select %100, %98, %105 : vector<4x32xi1>, vector<4x32xf32>
      %c0_65 = arith.constant 0 : index
      %c0_66 = arith.constant 0 : index
      %c0_67 = arith.constant 0 : index
      %107 = vector.load %arg10[%c0_65, %c0_66, %c0_67] : memref<2x32x16xbf16, #tpu.memory_space<vmem>>, vector<1x32x16xbf16>
      %108 = vector.shape_cast %107 : vector<1x32x16xbf16> to vector<32x16xbf16>
      %109 = arith.truncf %106 : vector<4x32xf32> to vector<4x32xbf16>
      %cst_68 = arith.constant dense<0.000000e+00> : vector<4x16xf32>
      %110 = tpu.matmul %109, %108, %cst_68 {dimension_numbers = #tpu.dot_dimension_numbers<[1], [0], [0], [1], [0, 0, 1, 1], [], []>} : vector<4x32xbf16>, vector<32x16xbf16>, vector<4x16xf32> -> vector<4x16xf32>
      %c0_69 = arith.constant 0 : index
      %c0_70 = arith.constant 0 : index
      %111 = vector.load %arg11[%c0_69, %c0_70] : memref<2x16xf32, #tpu.memory_space<vmem>>, vector<1x16xf32>
      %112 = vector.broadcast %111 : vector<1x16xf32> to vector<4x16xf32>
      %113 = arith.addf %110, %112 : vector<4x16xf32>
      %cst_71 = arith.constant 0.000000e+00 : f32
      %114 = vector.broadcast %cst_71 : f32 to vector<4x16xf32>
      %115 = arith.subf %114, %113 : vector<4x16xf32>
      %116 = math.exp %115 : vector<4x16xf32>
      %cst_72 = arith.constant 1.000000e+00 : f32
      %117 = vector.broadcast %cst_72 : f32 to vector<4x16xf32>
      %118 = arith.addf %117, %116 : vector<4x16xf32>
      %cst_73 = arith.constant 1.000000e+00 : f32
      %119 = vector.broadcast %cst_73 : f32 to vector<4x16xf32>
      %120 = arith.divf %119, %118 : vector<4x16xf32>
      %cst_74 = arith.constant 0.000000e+00 : f32
      %121 = vector.broadcast %cst_74 : f32 to vector<4x32xf32>
      %122 = arith.cmpf ogt, %77, %121 : vector<4x32xf32>
      %cst_75 = arith.constant 0.000000e+00 : f32
      %123 = vector.broadcast %cst_75 : f32 to vector<4x32xf32>
      %124 = arith.minimumf %77, %123 : vector<4x32xf32>
      %125 = math.exp %124 : vector<4x32xf32>
      %cst_76 = arith.constant 1.000000e+00 : f32
      %126 = vector.broadcast %cst_76 : f32 to vector<4x32xf32>
      %127 = arith.subf %125, %126 : vector<4x32xf32>
      %128 = arith.select %122, %77, %127 : vector<4x32xi1>, vector<4x32xf32>
      %c6_77 = arith.constant 6 : index
      %c0_78 = arith.constant 0 : index
      %c0_79 = arith.constant 0 : index
      %129 = vector.load %arg6[%c6_77, %c0_78, %c0_79] : memref<10x32x32xbf16, #tpu.memory_space<vmem>>, vector<1x32x32xbf16>
      %130 = vector.shape_cast %129 : vector<1x32x32xbf16> to vector<32x32xbf16>
      %131 = arith.truncf %128 : vector<4x32xf32> to vector<4x32xbf16>
      %cst_80 = arith.constant dense<0.000000e+00> : vector<4x32xf32>
      %132 = tpu.matmul %131, %130, %cst_80 {dimension_numbers = #tpu.dot_dimension_numbers<[1], [0], [0], [1], [0, 0, 1, 1], [], []>} : vector<4x32xbf16>, vector<32x32xbf16>, vector<4x32xf32> -> vector<4x32xf32>
      %c7 = arith.constant 7 : index
      %c0_81 = arith.constant 0 : index
      %133 = vector.load %arg8[%c7, %c0_81] : memref<10x32xf32, #tpu.memory_space<vmem>>, vector<1x32xf32>
      %134 = vector.broadcast %133 : vector<1x32xf32> to vector<4x32xf32>
      %135 = arith.addf %132, %134 : vector<4x32xf32>
      %cst_82 = arith.constant 0.000000e+00 : f32
      %136 = vector.broadcast %cst_82 : f32 to vector<4x32xf32>
      %137 = arith.cmpf ogt, %135, %136 : vector<4x32xf32>
      %cst_83 = arith.constant 0.000000e+00 : f32
      %138 = vector.broadcast %cst_83 : f32 to vector<4x32xf32>
      %139 = arith.minimumf %135, %138 : vector<4x32xf32>
      %140 = math.exp %139 : vector<4x32xf32>
      %cst_84 = arith.constant 1.000000e+00 : f32
      %141 = vector.broadcast %cst_84 : f32 to vector<4x32xf32>
      %142 = arith.subf %140, %141 : vector<4x32xf32>
      %143 = arith.select %137, %135, %142 : vector<4x32xi1>, vector<4x32xf32>
      %c1_85 = arith.constant 1 : index
      %c0_86 = arith.constant 0 : index
      %c0_87 = arith.constant 0 : index
      %144 = vector.load %arg10[%c1_85, %c0_86, %c0_87] : memref<2x32x16xbf16, #tpu.memory_space<vmem>>, vector<1x32x16xbf16>
      %145 = vector.shape_cast %144 : vector<1x32x16xbf16> to vector<32x16xbf16>
      %146 = arith.truncf %143 : vector<4x32xf32> to vector<4x32xbf16>
      %cst_88 = arith.constant dense<0.000000e+00> : vector<4x16xf32>
      %147 = tpu.matmul %146, %145, %cst_88 {dimension_numbers = #tpu.dot_dimension_numbers<[1], [0], [0], [1], [0, 0, 1, 1], [], []>} : vector<4x32xbf16>, vector<32x16xbf16>, vector<4x16xf32> -> vector<4x16xf32>
      %c1_89 = arith.constant 1 : index
      %c0_90 = arith.constant 0 : index
      %148 = vector.load %arg11[%c1_89, %c0_90] : memref<2x16xf32, #tpu.memory_space<vmem>>, vector<1x16xf32>
      %149 = vector.broadcast %148 : vector<1x16xf32> to vector<4x16xf32>
      %150 = arith.addf %147, %149 : vector<4x16xf32>
      %cst_91 = arith.constant 0.000000e+00 : f32
      %151 = vector.broadcast %cst_91 : f32 to vector<4x16xf32>
      %152 = arith.subf %151, %150 : vector<4x16xf32>
      %153 = math.exp %152 : vector<4x16xf32>
      %cst_92 = arith.constant 1.000000e+00 : f32
      %154 = vector.broadcast %cst_92 : f32 to vector<4x16xf32>
      %155 = arith.addf %154, %153 : vector<4x16xf32>
      %cst_93 = arith.constant 1.000000e+00 : f32
      %156 = vector.broadcast %cst_93 : f32 to vector<4x16xf32>
      %157 = arith.divf %156, %155 : vector<4x16xf32>
      %cst_94 = arith.constant 5.000000e-01 : f32
      %158 = vector.broadcast %cst_94 : f32 to vector<4x16xf32>
      %159 = arith.addf %120, %158 : vector<4x16xf32>
      %160 = math.floor %159 : vector<4x16xf32>
      %c0_95 = arith.constant 0 : index
      %c0_96 = arith.constant 0 : index
      %161 = vector.load %arg5[%c0_95, %c0_96] : memref<16x32xbf16, #tpu.memory_space<vmem>>, vector<16x32xbf16>
      %162 = arith.truncf %160 : vector<4x16xf32> to vector<4x16xbf16>
      %cst_97 = arith.constant dense<0.000000e+00> : vector<4x32xf32>
      %163 = tpu.matmul %162, %161, %cst_97 {dimension_numbers = #tpu.dot_dimension_numbers<[1], [0], [0], [1], [0, 0, 1, 1], [], []>} : vector<4x16xbf16>, vector<16x32xbf16>, vector<4x32xf32> -> vector<4x32xf32>
      %c3 = arith.constant 3 : index
      %c0_98 = arith.constant 0 : index
      %164 = vector.load %arg8[%c3, %c0_98] : memref<10x32xf32, #tpu.memory_space<vmem>>, vector<1x32xf32>
      %165 = vector.broadcast %164 : vector<1x32xf32> to vector<4x32xf32>
      %166 = arith.addf %163, %165 : vector<4x32xf32>
      %cst_99 = arith.constant 0.000000e+00 : f32
      %167 = vector.broadcast %cst_99 : f32 to vector<4x32xf32>
      %168 = arith.cmpf ogt, %166, %167 : vector<4x32xf32>
      %cst_100 = arith.constant 0.000000e+00 : f32
      %169 = vector.broadcast %cst_100 : f32 to vector<4x32xf32>
      %170 = arith.minimumf %166, %169 : vector<4x32xf32>
      %171 = math.exp %170 : vector<4x32xf32>
      %cst_101 = arith.constant 1.000000e+00 : f32
      %172 = vector.broadcast %cst_101 : f32 to vector<4x32xf32>
      %173 = arith.subf %171, %172 : vector<4x32xf32>
      %174 = arith.select %168, %166, %173 : vector<4x32xi1>, vector<4x32xf32>
      %c2_102 = arith.constant 2 : index
      %c0_103 = arith.constant 0 : index
      %c0_104 = arith.constant 0 : index
      %175 = vector.load %arg6[%c2_102, %c0_103, %c0_104] : memref<10x32x32xbf16, #tpu.memory_space<vmem>>, vector<1x32x32xbf16>
      %176 = vector.shape_cast %175 : vector<1x32x32xbf16> to vector<32x32xbf16>
      %177 = arith.truncf %174 : vector<4x32xf32> to vector<4x32xbf16>
      %cst_105 = arith.constant dense<0.000000e+00> : vector<4x32xf32>
      %178 = tpu.matmul %177, %176, %cst_105 {dimension_numbers = #tpu.dot_dimension_numbers<[1], [0], [0], [1], [0, 0, 1, 1], [], []>} : vector<4x32xbf16>, vector<32x32xbf16>, vector<4x32xf32> -> vector<4x32xf32>
      %c4_106 = arith.constant 4 : index
      %c0_107 = arith.constant 0 : index
      %179 = vector.load %arg8[%c4_106, %c0_107] : memref<10x32xf32, #tpu.memory_space<vmem>>, vector<1x32xf32>
      %180 = vector.broadcast %179 : vector<1x32xf32> to vector<4x32xf32>
      %181 = arith.addf %178, %180 : vector<4x32xf32>
      %cst_108 = arith.constant 0.000000e+00 : f32
      %182 = vector.broadcast %cst_108 : f32 to vector<4x32xf32>
      %183 = arith.cmpf ogt, %181, %182 : vector<4x32xf32>
      %cst_109 = arith.constant 0.000000e+00 : f32
      %184 = vector.broadcast %cst_109 : f32 to vector<4x32xf32>
      %185 = arith.minimumf %181, %184 : vector<4x32xf32>
      %186 = math.exp %185 : vector<4x32xf32>
      %cst_110 = arith.constant 1.000000e+00 : f32
      %187 = vector.broadcast %cst_110 : f32 to vector<4x32xf32>
      %188 = arith.subf %186, %187 : vector<4x32xf32>
      %189 = arith.select %183, %181, %188 : vector<4x32xi1>, vector<4x32xf32>
      %c3_111 = arith.constant 3 : index
      %c0_112 = arith.constant 0 : index
      %c0_113 = arith.constant 0 : index
      %190 = vector.load %arg6[%c3_111, %c0_112, %c0_113] : memref<10x32x32xbf16, #tpu.memory_space<vmem>>, vector<1x32x32xbf16>
      %191 = vector.shape_cast %190 : vector<1x32x32xbf16> to vector<32x32xbf16>
      %192 = arith.truncf %189 : vector<4x32xf32> to vector<4x32xbf16>
      %cst_114 = arith.constant dense<0.000000e+00> : vector<4x32xf32>
      %193 = tpu.matmul %192, %191, %cst_114 {dimension_numbers = #tpu.dot_dimension_numbers<[1], [0], [0], [1], [0, 0, 1, 1], [], []>} : vector<4x32xbf16>, vector<32x32xbf16>, vector<4x32xf32> -> vector<4x32xf32>
      %c5_115 = arith.constant 5 : index
      %c0_116 = arith.constant 0 : index
      %194 = vector.load %arg8[%c5_115, %c0_116] : memref<10x32xf32, #tpu.memory_space<vmem>>, vector<1x32xf32>
      %195 = vector.broadcast %194 : vector<1x32xf32> to vector<4x32xf32>
      %196 = arith.addf %193, %195 : vector<4x32xf32>
      %cst_117 = arith.constant 0.000000e+00 : f32
      %197 = vector.broadcast %cst_117 : f32 to vector<4x32xf32>
      %198 = arith.cmpf ogt, %196, %197 : vector<4x32xf32>
      %cst_118 = arith.constant 0.000000e+00 : f32
      %199 = vector.broadcast %cst_118 : f32 to vector<4x32xf32>
      %200 = arith.minimumf %196, %199 : vector<4x32xf32>
      %201 = math.exp %200 : vector<4x32xf32>
      %cst_119 = arith.constant 1.000000e+00 : f32
      %202 = vector.broadcast %cst_119 : f32 to vector<4x32xf32>
      %203 = arith.subf %201, %202 : vector<4x32xf32>
      %204 = arith.select %198, %196, %203 : vector<4x32xi1>, vector<4x32xf32>
      %c7_120 = arith.constant 7 : index
      %c0_121 = arith.constant 0 : index
      %c0_122 = arith.constant 0 : index
      %205 = vector.load %arg6[%c7_120, %c0_121, %c0_122] : memref<10x32x32xbf16, #tpu.memory_space<vmem>>, vector<1x32x32xbf16>
      %206 = vector.shape_cast %205 : vector<1x32x32xbf16> to vector<32x32xbf16>
      %207 = arith.truncf %204 : vector<4x32xf32> to vector<4x32xbf16>
      %cst_123 = arith.constant dense<0.000000e+00> : vector<4x32xf32>
      %208 = tpu.matmul %207, %206, %cst_123 {dimension_numbers = #tpu.dot_dimension_numbers<[1], [0], [0], [1], [0, 0, 1, 1], [], []>} : vector<4x32xbf16>, vector<32x32xbf16>, vector<4x32xf32> -> vector<4x32xf32>
      %209 = arith.addf %208, %78 : vector<4x32xf32>
      %cst_124 = arith.constant 0.000000e+00 : f32
      %210 = vector.broadcast %cst_124 : f32 to vector<4x32xf32>
      %211 = arith.cmpf ogt, %209, %210 : vector<4x32xf32>
      %cst_125 = arith.constant 0.000000e+00 : f32
      %212 = vector.broadcast %cst_125 : f32 to vector<4x32xf32>
      %213 = arith.minimumf %209, %212 : vector<4x32xf32>
      %214 = math.exp %213 : vector<4x32xf32>
      %cst_126 = arith.constant 1.000000e+00 : f32
      %215 = vector.broadcast %cst_126 : f32 to vector<4x32xf32>
      %216 = arith.subf %214, %215 : vector<4x32xf32>
      %217 = arith.select %211, %209, %216 : vector<4x32xi1>, vector<4x32xf32>
      %c8 = arith.constant 8 : index
      %c0_127 = arith.constant 0 : index
      %c0_128 = arith.constant 0 : index
      %218 = vector.load %arg6[%c8, %c0_127, %c0_128] : memref<10x32x32xbf16, #tpu.memory_space<vmem>>, vector<1x32x32xbf16>
      %219 = vector.shape_cast %218 : vector<1x32x32xbf16> to vector<32x32xbf16>
      %220 = arith.truncf %217 : vector<4x32xf32> to vector<4x32xbf16>
      %cst_129 = arith.constant dense<0.000000e+00> : vector<4x32xf32>
      %221 = tpu.matmul %220, %219, %cst_129 {dimension_numbers = #tpu.dot_dimension_numbers<[1], [0], [0], [1], [0, 0, 1, 1], [], []>} : vector<4x32xbf16>, vector<32x32xbf16>, vector<4x32xf32> -> vector<4x32xf32>
      %c8_130 = arith.constant 8 : index
      %c0_131 = arith.constant 0 : index
      %222 = vector.load %arg8[%c8_130, %c0_131] : memref<10x32xf32, #tpu.memory_space<vmem>>, vector<1x32xf32>
      %223 = vector.broadcast %222 : vector<1x32xf32> to vector<4x32xf32>
      %224 = arith.addf %221, %223 : vector<4x32xf32>
      %cst_132 = arith.constant 0.000000e+00 : f32
      %225 = vector.broadcast %cst_132 : f32 to vector<4x32xf32>
      %226 = arith.cmpf ogt, %224, %225 : vector<4x32xf32>
      %cst_133 = arith.constant 0.000000e+00 : f32
      %227 = vector.broadcast %cst_133 : f32 to vector<4x32xf32>
      %228 = arith.minimumf %224, %227 : vector<4x32xf32>
      %229 = math.exp %228 : vector<4x32xf32>
      %cst_134 = arith.constant 1.000000e+00 : f32
      %230 = vector.broadcast %cst_134 : f32 to vector<4x32xf32>
      %231 = arith.subf %229, %230 : vector<4x32xf32>
      %232 = arith.select %226, %224, %231 : vector<4x32xi1>, vector<4x32xf32>
      %c9 = arith.constant 9 : index
      %c0_135 = arith.constant 0 : index
      %c0_136 = arith.constant 0 : index
      %233 = vector.load %arg6[%c9, %c0_135, %c0_136] : memref<10x32x32xbf16, #tpu.memory_space<vmem>>, vector<1x32x32xbf16>
      %234 = vector.shape_cast %233 : vector<1x32x32xbf16> to vector<32x32xbf16>
      %235 = arith.truncf %232 : vector<4x32xf32> to vector<4x32xbf16>
      %cst_137 = arith.constant dense<0.000000e+00> : vector<4x32xf32>
      %236 = tpu.matmul %235, %234, %cst_137 {dimension_numbers = #tpu.dot_dimension_numbers<[1], [0], [0], [1], [0, 0, 1, 1], [], []>} : vector<4x32xbf16>, vector<32x32xbf16>, vector<4x32xf32> -> vector<4x32xf32>
      %c9_138 = arith.constant 9 : index
      %c0_139 = arith.constant 0 : index
      %237 = vector.load %arg8[%c9_138, %c0_139] : memref<10x32xf32, #tpu.memory_space<vmem>>, vector<1x32xf32>
      %238 = vector.broadcast %237 : vector<1x32xf32> to vector<4x32xf32>
      %239 = arith.addf %236, %238 : vector<4x32xf32>
      %cst_140 = arith.constant 0.000000e+00 : f32
      %240 = vector.broadcast %cst_140 : f32 to vector<4x32xf32>
      %241 = arith.cmpf ogt, %239, %240 : vector<4x32xf32>
      %cst_141 = arith.constant 0.000000e+00 : f32
      %242 = vector.broadcast %cst_141 : f32 to vector<4x32xf32>
      %243 = arith.minimumf %239, %242 : vector<4x32xf32>
      %244 = math.exp %243 : vector<4x32xf32>
      %cst_142 = arith.constant 1.000000e+00 : f32
      %245 = vector.broadcast %cst_142 : f32 to vector<4x32xf32>
      %246 = arith.subf %244, %245 : vector<4x32xf32>
      %247 = arith.select %241, %239, %246 : vector<4x32xi1>, vector<4x32xf32>
      %c0_143 = arith.constant 0 : index
      %c0_144 = arith.constant 0 : index
      %248 = vector.load %arg12[%c0_143, %c0_144] : memref<32x24xbf16, #tpu.memory_space<vmem>>, vector<32x24xbf16>
      %249 = arith.truncf %247 : vector<4x32xf32> to vector<4x32xbf16>
      %cst_145 = arith.constant dense<0.000000e+00> : vector<4x24xf32>
      %250 = tpu.matmul %249, %248, %cst_145 {dimension_numbers = #tpu.dot_dimension_numbers<[1], [0], [0], [1], [0, 0, 1, 1], [], []>} : vector<4x32xbf16>, vector<32x24xbf16>, vector<4x24xf32> -> vector<4x24xf32>
      %c0_146 = arith.constant 0 : index
      %c0_147 = arith.constant 0 : index
      %251 = vector.load %arg13[%c0_146, %c0_147] : memref<1x24xf32, #tpu.memory_space<vmem>>, vector<1x24xf32>
      %252 = vector.broadcast %251 : vector<1x24xf32> to vector<4x24xf32>
      %253 = arith.addf %250, %252 : vector<4x24xf32>
      %c2_148 = arith.constant 2 : index
      %c0_149 = arith.constant 0 : index
      %c0_150 = arith.constant 0 : index
      %254 = vector.load %arg7[%c2_148, %c0_149, %c0_150] : memref<4x32x96xbf16, #tpu.memory_space<vmem>>, vector<1x32x96xbf16>
      %255 = vector.shape_cast %254 : vector<1x32x96xbf16> to vector<32x96xbf16>
      %256 = arith.truncf %204 : vector<4x32xf32> to vector<4x32xbf16>
      %cst_151 = arith.constant dense<0.000000e+00> : vector<4x96xf32>
      %257 = tpu.matmul %256, %255, %cst_151 {dimension_numbers = #tpu.dot_dimension_numbers<[1], [0], [0], [1], [0, 0, 1, 1], [], []>} : vector<4x32xbf16>, vector<32x96xbf16>, vector<4x96xf32> -> vector<4x96xf32>
      %c1_152 = arith.constant 1 : index
      %c0_153 = arith.constant 0 : index
      %258 = vector.load %arg9[%c1_152, %c0_153] : memref<3x96xf32, #tpu.memory_space<vmem>>, vector<1x96xf32>
      %259 = vector.broadcast %258 : vector<1x96xf32> to vector<4x96xf32>
      %260 = arith.addf %257, %259 : vector<4x96xf32>
      %c1_154 = arith.constant 1 : index
      %c0_155 = arith.constant 0 : index
      %c0_156 = arith.constant 0 : index
      %261 = vector.load %arg7[%c1_154, %c0_155, %c0_156] : memref<4x32x96xbf16, #tpu.memory_space<vmem>>, vector<1x32x96xbf16>
      %262 = vector.shape_cast %261 : vector<1x32x96xbf16> to vector<32x96xbf16>
      %263 = arith.truncf %68 : vector<4x32xf32> to vector<4x32xbf16>
      %cst_157 = arith.constant dense<0.000000e+00> : vector<4x96xf32>
      %264 = tpu.matmul %263, %262, %cst_157 {dimension_numbers = #tpu.dot_dimension_numbers<[1], [0], [0], [1], [0, 0, 1, 1], [], []>} : vector<4x32xbf16>, vector<32x96xbf16>, vector<4x96xf32> -> vector<4x96xf32>
      %265 = arith.addf %264, %260 : vector<4x96xf32>
      %c3_158 = arith.constant 3 : index
      %c0_159 = arith.constant 0 : index
      %c0_160 = arith.constant 0 : index
      %266 = vector.load %arg7[%c3_158, %c0_159, %c0_160] : memref<4x32x96xbf16, #tpu.memory_space<vmem>>, vector<1x32x96xbf16>
      %267 = vector.shape_cast %266 : vector<1x32x96xbf16> to vector<32x96xbf16>
      %268 = arith.truncf %arg21 : vector<4x32xf32> to vector<4x32xbf16>
      %cst_161 = arith.constant dense<0.000000e+00> : vector<4x96xf32>
      %269 = tpu.matmul %268, %267, %cst_161 {dimension_numbers = #tpu.dot_dimension_numbers<[1], [0], [0], [1], [0, 0, 1, 1], [], []>} : vector<4x32xbf16>, vector<32x96xbf16>, vector<4x96xf32> -> vector<4x96xf32>
      %c2_162 = arith.constant 2 : index
      %c0_163 = arith.constant 0 : index
      %270 = vector.load %arg9[%c2_162, %c0_163] : memref<3x96xf32, #tpu.memory_space<vmem>>, vector<1x96xf32>
      %271 = vector.broadcast %270 : vector<1x96xf32> to vector<4x96xf32>
      %272 = arith.addf %269, %271 : vector<4x96xf32>
      %273 = vector.extract_strided_slice %265 {offsets = [0, 0], sizes = [4, 32], strides = [1, 1]} : vector<4x96xf32> to vector<4x32xf32>
      %274 = vector.extract_strided_slice %272 {offsets = [0, 0], sizes = [4, 32], strides = [1, 1]} : vector<4x96xf32> to vector<4x32xf32>
      %275 = arith.addf %273, %274 : vector<4x32xf32>
      %cst_164 = arith.constant 0.000000e+00 : f32
      %276 = vector.broadcast %cst_164 : f32 to vector<4x32xf32>
      %277 = arith.subf %276, %275 : vector<4x32xf32>
      %278 = math.exp %277 : vector<4x32xf32>
      %cst_165 = arith.constant 1.000000e+00 : f32
      %279 = vector.broadcast %cst_165 : f32 to vector<4x32xf32>
      %280 = arith.addf %279, %278 : vector<4x32xf32>
      %cst_166 = arith.constant 1.000000e+00 : f32
      %281 = vector.broadcast %cst_166 : f32 to vector<4x32xf32>
      %282 = arith.divf %281, %280 : vector<4x32xf32>
      %283 = vector.extract_strided_slice %265 {offsets = [0, 32], sizes = [4, 32], strides = [1, 1]} : vector<4x96xf32> to vector<4x32xf32>
      %284 = vector.extract_strided_slice %272 {offsets = [0, 32], sizes = [4, 32], strides = [1, 1]} : vector<4x96xf32> to vector<4x32xf32>
      %285 = arith.addf %283, %284 : vector<4x32xf32>
      %cst_167 = arith.constant 0.000000e+00 : f32
      %286 = vector.broadcast %cst_167 : f32 to vector<4x32xf32>
      %287 = arith.subf %286, %285 : vector<4x32xf32>
      %288 = math.exp %287 : vector<4x32xf32>
      %cst_168 = arith.constant 1.000000e+00 : f32
      %289 = vector.broadcast %cst_168 : f32 to vector<4x32xf32>
      %290 = arith.addf %289, %288 : vector<4x32xf32>
      %cst_169 = arith.constant 1.000000e+00 : f32
      %291 = vector.broadcast %cst_169 : f32 to vector<4x32xf32>
      %292 = arith.divf %291, %290 : vector<4x32xf32>
      %293 = vector.extract_strided_slice %265 {offsets = [0, 64], sizes = [4, 32], strides = [1, 1]} : vector<4x96xf32> to vector<4x32xf32>
      %294 = vector.extract_strided_slice %272 {offsets = [0, 64], sizes = [4, 32], strides = [1, 1]} : vector<4x96xf32> to vector<4x32xf32>
      %295 = arith.mulf %282, %294 : vector<4x32xf32>
      %296 = arith.addf %293, %295 : vector<4x32xf32>
      %297 = math.tanh %296 : vector<4x32xf32>
      %cst_170 = arith.constant 1.000000e+00 : f32
      %298 = vector.broadcast %cst_170 : f32 to vector<4x32xf32>
      %299 = arith.subf %298, %292 : vector<4x32xf32>
      %300 = arith.mulf %299, %297 : vector<4x32xf32>
      %301 = arith.mulf %292, %arg21 : vector<4x32xf32>
      %302 = arith.addf %300, %301 : vector<4x32xf32>
      %cst_171 = arith.constant 1.000000e-03 : f32
      %303 = vector.broadcast %cst_171 : f32 to vector<4x16xf32>
      %304 = arith.maximumf %120, %303 : vector<4x16xf32>
      %305 = math.log %304 : vector<4x16xf32>
      %cst_172 = arith.constant 1.000000e-03 : f32
      %306 = vector.broadcast %cst_172 : f32 to vector<4x16xf32>
      %307 = arith.maximumf %157, %306 : vector<4x16xf32>
      %308 = math.log %307 : vector<4x16xf32>
      %309 = arith.subf %305, %308 : vector<4x16xf32>
      %310 = arith.mulf %120, %309 : vector<4x16xf32>
      %cst_173 = arith.constant 1.000000e+00 : f32
      %311 = vector.broadcast %cst_173 : f32 to vector<4x16xf32>
      %312 = arith.subf %311, %120 : vector<4x16xf32>
      %cst_174 = arith.constant 1.000000e+00 : f32
      %313 = vector.broadcast %cst_174 : f32 to vector<4x16xf32>
      %314 = arith.subf %313, %120 : vector<4x16xf32>
      %cst_175 = arith.constant 1.000000e-03 : f32
      %315 = vector.broadcast %cst_175 : f32 to vector<4x16xf32>
      %316 = arith.maximumf %314, %315 : vector<4x16xf32>
      %317 = math.log %316 : vector<4x16xf32>
      %cst_176 = arith.constant 1.000000e+00 : f32
      %318 = vector.broadcast %cst_176 : f32 to vector<4x16xf32>
      %319 = arith.subf %318, %157 : vector<4x16xf32>
      %cst_177 = arith.constant 1.000000e-03 : f32
      %320 = vector.broadcast %cst_177 : f32 to vector<4x16xf32>
      %321 = arith.maximumf %319, %320 : vector<4x16xf32>
      %322 = math.log %321 : vector<4x16xf32>
      %323 = arith.subf %317, %322 : vector<4x16xf32>
      %324 = arith.mulf %312, %323 : vector<4x16xf32>
      %325 = arith.addf %310, %324 : vector<4x16xf32>
      %cst_178 = arith.constant dense<0.000000e+00> : vector<4xf32>
      %326 = vector.multi_reduction <add>, %325, %cst_178 [1] : vector<4x16xf32> to vector<4xf32>
      %327 = vector.shape_cast %326 : vector<4xf32> to vector<4x1xf32>
      %cst_179 = arith.constant dense<0.000000e+00> : vector<1xf32>
      %328 = vector.multi_reduction <add>, %327, %cst_179 [0] : vector<4x1xf32> to vector<1xf32>
      %329 = vector.shape_cast %328 : vector<1xf32> to vector<1x1xf32>
      %cst_180 = arith.constant 2.500000e-01 : f32
      %330 = vector.broadcast %cst_180 : f32 to vector<1x1xf32>
      %331 = arith.mulf %329, %330 : vector<1x1xf32>
      %332 = arith.index_cast %arg20 : i32 to index
      %c0_181 = arith.constant 0 : index
      %c0_182 = arith.constant 0 : index
      %333 = vector.load %arg16[%332, %c0_181, %c0_182] : memref<8x4x24xf32, #tpu.memory_space<vmem>>, vector<1x4x24xf32>
      %334 = vector.shape_cast %333 : vector<1x4x24xf32> to vector<4x24xf32>
      %335 = vector.shape_cast %253 : vector<4x24xf32> to vector<1x4x24xf32>
      tpu.vector_store %arg16[%332, %c0_181, %c0_182], %335 {strides = array<i32>} : memref<8x4x24xf32, #tpu.memory_space<vmem>>, vector<1x4x24xf32>,
      %336 = arith.addf %arg22, %331 : vector<1x1xf32>
      scf.yield %302, %336 : vector<4x32xf32>, vector<1x1xf32>
    }
    %c8_i32_5 = arith.constant 8 : i32
    %c0_6 = arith.constant 0 : index
    %c0_7 = arith.constant 0 : index
    %8 = vector.load %arg18[%c0_6, %c0_7] : memref<4x32xf32, #tpu.memory_space<vmem>>, vector<4x32xf32>
    tpu.vector_store %arg18[%c0_6, %c0_7], %7#0 {strides = array<i32>} : memref<4x32xf32, #tpu.memory_space<vmem>>, vector<4x32xf32>,
    %c0_8 = arith.constant 0 : index
    %c0_9 = arith.constant 0 : index
    %9 = vector.load %arg19[%c0_8, %c0_9] : memref<4x32xf32, #tpu.memory_space<vmem>>, vector<4x32xf32>
    tpu.vector_store %arg19[%c0_8, %c0_9], %4 {strides = array<i32>} : memref<4x32xf32, #tpu.memory_space<vmem>>, vector<4x32xf32>,
    %c0_10 = arith.constant 0 : index
    %c0_11 = arith.constant 0 : index
    %10 = vector.load %arg17[%c0_10, %c0_11] : memref<1x1xf32, #tpu.memory_space<vmem>>, vector<1x1xf32>
    %11 = arith.addf %10, %7#1 : vector<1x1xf32>
    %c0_12 = arith.constant 0 : index
    %c0_13 = arith.constant 0 : index
    %12 = vector.load %arg17[%c0_12, %c0_13] : memref<1x1xf32, #tpu.memory_space<vmem>>, vector<1x1xf32>
    tpu.vector_store %arg17[%c0_12, %c0_13], %11 {strides = array<i32>} : memref<1x1xf32, #tpu.memory_space<vmem>>, vector<1x1xf32>,
    %c0_i32_14 = arith.constant 0 : i32
    %13 = arith.cmpi eq, %arg0, %c0_i32_14 : i32
    %14 = arith.extui %13 : i1 to i32
    %c0_i32_15 = arith.constant 0 : i32
    %15 = arith.cmpi ne, %14, %c0_i32_15 : i32
    scf.if %15 {
      %c0_16 = arith.constant 0 : index
      %c0_17 = arith.constant 0 : index
      %16 = vector.load %arg17[%c0_16, %c0_17] : memref<1x1xf32, #tpu.memory_space<vmem>>, vector<1x1xf32>
      %cst_18 = arith.constant 1.250000e-01 : f32
      %17 = vector.broadcast %cst_18 : f32 to vector<1x1xf32>
      %18 = arith.mulf %16, %17 : vector<1x1xf32>
      %c0_19 = arith.constant 0 : index
      %c0_20 = arith.constant 0 : index
      %19 = vector.load %arg17[%c0_19, %c0_20] : memref<1x1xf32, #tpu.memory_space<vmem>>, vector<1x1xf32>
      tpu.vector_store %arg17[%c0_19, %c0_20], %18 {strides = array<i32>} : memref<1x1xf32, #tpu.memory_space<vmem>>, vector<1x1xf32>,
    } else {
    }
    return
  }
  func.func @transform_0(%arg0: i32) -> (i32, i32, i32) {
    %c0_i32 = arith.constant 0 : i32
    %c0_i32_0 = arith.constant 0 : i32
    %c0_i32_1 = arith.constant 0 : i32
    return %arg0, %c0_i32, %c0_i32_0 : i32, i32, i32
  }
  func.func @transform_1(%arg0: i32) -> (i32, i32) {
    %c0_i32 = arith.constant 0 : i32
    %c0_i32_0 = arith.constant 0 : i32
    return %arg0, %c0_i32 : i32, i32
  }
  func.func @transform_2(%arg0: i32) -> (i32, i32, i32) {
    %c0_i32 = arith.constant 0 : i32
    %c0_i32_0 = arith.constant 0 : i32
    %c0_i32_1 = arith.constant 0 : i32
    return %arg0, %c0_i32, %c0_i32_0 : i32, i32, i32
  }
  func.func @transform_3(%arg0: i32) -> (i32, i32) {
    %c0_i32 = arith.constant 0 : i32
    %c0_i32_0 = arith.constant 0 : i32
    %c0_i32_1 = arith.constant 0 : i32
    return %c0_i32, %c0_i32_0 : i32, i32
  }
  func.func @transform_4(%arg0: i32) -> (i32, i32) {
    %c0_i32 = arith.constant 0 : i32
    %c0_i32_0 = arith.constant 0 : i32
    %c0_i32_1 = arith.constant 0 : i32
    return %c0_i32, %c0_i32_0 : i32, i32
  }
  func.func @transform_5(%arg0: i32) -> (i32, i32, i32) {
    %c0_i32 = arith.constant 0 : i32
    %c0_i32_0 = arith.constant 0 : i32
    %c0_i32_1 = arith.constant 0 : i32
    %c0_i32_2 = arith.constant 0 : i32
    return %c0_i32, %c0_i32_0, %c0_i32_1 : i32, i32, i32
  }
  func.func @transform_6(%arg0: i32) -> (i32, i32, i32) {
    %c0_i32 = arith.constant 0 : i32
    %c0_i32_0 = arith.constant 0 : i32
    %c0_i32_1 = arith.constant 0 : i32
    %c0_i32_2 = arith.constant 0 : i32
    return %c0_i32, %c0_i32_0, %c0_i32_1 : i32, i32, i32
  }
  func.func @transform_7(%arg0: i32) -> (i32, i32) {
    %c0_i32 = arith.constant 0 : i32
    %c0_i32_0 = arith.constant 0 : i32
    %c0_i32_1 = arith.constant 0 : i32
    return %c0_i32, %c0_i32_0 : i32, i32
  }
  func.func @transform_8(%arg0: i32) -> (i32, i32) {
    %c0_i32 = arith.constant 0 : i32
    %c0_i32_0 = arith.constant 0 : i32
    %c0_i32_1 = arith.constant 0 : i32
    return %c0_i32, %c0_i32_0 : i32, i32
  }
  func.func @transform_9(%arg0: i32) -> (i32, i32, i32) {
    %c0_i32 = arith.constant 0 : i32
    %c0_i32_0 = arith.constant 0 : i32
    %c0_i32_1 = arith.constant 0 : i32
    %c0_i32_2 = arith.constant 0 : i32
    return %c0_i32, %c0_i32_0, %c0_i32_1 : i32, i32, i32
  }
  func.func @transform_10(%arg0: i32) -> (i32, i32) {
    %c0_i32 = arith.constant 0 : i32
    %c0_i32_0 = arith.constant 0 : i32
    %c0_i32_1 = arith.constant 0 : i32
    return %c0_i32, %c0_i32_0 : i32, i32
  }
  func.func @transform_11(%arg0: i32) -> (i32, i32) {
    %c0_i32 = arith.constant 0 : i32
    %c0_i32_0 = arith.constant 0 : i32
    %c0_i32_1 = arith.constant 0 : i32
    return %c0_i32, %c0_i32_0 : i32, i32
  }
  func.func @transform_12(%arg0: i32) -> (i32, i32) {
    %c0_i32 = arith.constant 0 : i32
    %c0_i32_0 = arith.constant 0 : i32
    %c0_i32_1 = arith.constant 0 : i32
    return %c0_i32, %c0_i32_0 : i32, i32
  }
  func.func @transform_13(%arg0: i32) -> (i32, i32) {
    %c0_i32 = arith.constant 0 : i32
    %c0_i32_0 = arith.constant 0 : i32
    %c0_i32_1 = arith.constant 0 : i32
    return %c0_i32, %c0_i32_0 : i32, i32
  }
  func.func @transform_14(%arg0: i32) -> (i32, i32) {
    %c0_i32 = arith.constant 0 : i32
    %c0_i32_0 = arith.constant 0 : i32
    %c0_i32_1 = arith.constant 0 : i32
    return %c0_i32, %c0_i32_0 : i32, i32
  }
  func.func @transform_15(%arg0: i32) -> (i32, i32, i32) {
    %c0_i32 = arith.constant 0 : i32
    %c0_i32_0 = arith.constant 0 : i32
    %c0_i32_1 = arith.constant 0 : i32
    return %arg0, %c0_i32, %c0_i32_0 : i32, i32, i32
  }
  func.func @transform_16(%arg0: i32) -> (i32, i32) {
    %c0_i32 = arith.constant 0 : i32
    %c0_i32_0 = arith.constant 0 : i32
    %c0_i32_1 = arith.constant 0 : i32
    return %c0_i32, %c0_i32_0 : i32, i32
  }
}

</mosaic_0001>

<llo_original>
// kernel: tpu_custom_call.1
$region0: #{tpu_custom_call.1}
  #allocation0 [shape = 'u32[]', space=smem, size = 0x4, offset = 0x4, fixed_abs, tag = 'smem constant byte address 0x4 - core index']
  #allocation1 [shape = 'u32[144,128]{1,0:T(1,128)}', space=vmem, size = 0x12000, scoped, tag = 'internal scratch']
  #allocation2 [shape = 'f32[4,32]{1,0:T(4,128)}', space=vmem, size = 0x800, scoped, tag = 'scratch operand']
  #allocation3 [shape = 'f32[4,32]{1,0:T(4,128)}', space=vmem, size = 0x800, scoped, tag = 'scratch operand']
  %s0 = inlined_call_operand.hbm [shape: f32[8,4,24], index: 0, kind: input, shape index: {}]
  %s1 = inlined_call_operand.vmem [shape: f32[8,1], index: 1, kind: input, shape index: {}]
  %s2 = inlined_call_operand.hbm [shape: f32[8,4,16], index: 2, kind: input, shape index: {}]
  %s3 = inlined_call_operand.hbm [shape: bf16[24,32], index: 3, kind: input, shape index: {}]
  %s4 = inlined_call_operand.hbm [shape: bf16[16,32], index: 4, kind: input, shape index: {}]
  %s5 = inlined_call_operand.hbm [shape: bf16[10,32,32], index: 5, kind: input, shape index: {}]
  %s6 = inlined_call_operand.vmem [shape: bf16[4,32,96], index: 6, kind: input, shape index: {}]
  %s7 = inlined_call_operand.vmem [shape: f32[10,32], index: 7, kind: input, shape index: {}]
  %s8 = inlined_call_operand.hbm [shape: f32[3,96], index: 8, kind: input, shape index: {}]
  %s9 = inlined_call_operand.vmem [shape: bf16[2,32,16], index: 9, kind: input, shape index: {}]
  %s10 = inlined_call_operand.vmem [shape: f32[2,16], index: 10, kind: input, shape index: {}]
  %s11 = inlined_call_operand.vmem [shape: bf16[32,24], index: 11, kind: input, shape index: {}]
  %s12 = inlined_call_operand.vmem [shape: f32[1,24], index: 12, kind: input, shape index: {}]
  %s13 = inlined_call_operand.vmem [shape: f32[1,24], index: 13, kind: input, shape index: {}]
  %s14 = inlined_call_operand.vmem [shape: f32[1,24], index: 14, kind: input, shape index: {}]
  %s15 = inlined_call_operand.hbm [shape: f32[8,4,24], index: 15, kind: output, shape index: {0}]
  %s16 = inlined_call_operand.hbm [shape: f32[1,1], index: 16, kind: output, shape index: {1}]
  %17 = xla_tuple %s15, %s16
  %s18 = sld [smem:[#allocation0]]
  $region117: #{tpu_custom_call.1} parent=0
    _
  %s20 = ssub.s32 1, %s18
  %s21 = scalar_select 0, %s20, %s18
  $region1: #{tpu_custom_call.1} parent=0
    #allocation4 [shape = 'u8[16384]{0}', space=vmem, size = 0x4000, scoped, tag = 'input window, operand 0, single buffered']
    #allocation5 [shape = 's32[1]{0}', space=sflag, size = 0x4, scoped, tag = 'scoped memory for tpu_custom_call.1']
    #allocation6 [shape = 's32[1]{0}', space=sflag, size = 0x4, scoped, tag = 'scoped memory for tpu_custom_call.1']
    #allocation7 [shape = 'u8[16384]{0}', space=vmem, size = 0x4000, scoped, tag = 'input window, operand 2, single buffered']
    #allocation8 [shape = 's32[1]{0}', space=sflag, size = 0x4, scoped, tag = 'scoped memory for tpu_custom_call.1']
    #allocation9 [shape = 'u8[6144]{0}', space=vmem, size = 0x1800, scoped, tag = 'input window, operand 3, single buffered']
    #allocation10 [shape = 'u8[4096]{0}', space=vmem, size = 0x1000, scoped, tag = 'input window, operand 4, single buffered']
    #allocation11 [shape = 's32[1]{0}', space=sflag, size = 0x4, scoped, tag = 'scoped memory for tpu_custom_call.1']
    #allocation12 [shape = 'u8[81920]{0}', space=vmem, size = 0x14000, scoped, tag = 'input window, operand 5, single buffered']
    #allocation13 [shape = 'u8[2048]{0}', space=vmem, size = 0x800, scoped, tag = 'input window, operand 8, single buffered']
    #allocation14 [shape = 's32[1]{0}', space=sflag, size = 0x4, scoped, tag = 'scoped memory for tpu_custom_call.1']
    #allocation15 [shape = 'u8[16384]{0}', space=vmem, size = 0x4000, scoped, tag = 'output window, operand 0, single buffered']
    #allocation16 [shape = 'u8[512]{0}', space=vmem, size = 0x400, scoped, tag = 'output window, operand 1, single buffered']
    #allocation17 [shape = 's32[1]{0}', space=sflag, size = 0x4, scoped, tag = 'scoped memory for tpu_custom_call.1']
    %22 = vsyncpa [#allocation5], 0
    %23 = vsyncpa [#allocation8], 0
    %24 = vsyncpa [#allocation11], 0
    %25 = vsyncpa [#allocation14], 0
    %26 = vsyncpa [#allocation6], 0
    %27 = vsyncpa [#allocation17], 0
    // Predicated region
    $region2: #{tpu_custom_call.1} parent=1 // pred_check
      _
    $region3: #{tpu_custom_call.1} parent=1 // pred_check_branch
      %29 = sbr.rel (0) target = $region5
    $region4: #{tpu_custom_call.1} parent=1 // pred_region
      %s31 = ssub.s32 512, 512
      %32 = vsyncadd [#allocation5], %s31
      %s33 = sshll.u32 [#allocation4], 4
      %s34 = int_to_ptr.vmem [resolvable:$true] %s33
      %39 = dma.hbm_to_vmem [thread:$0]  %s0, 512, %s34, [#allocation5], 64, 64, 4
    $region5: #{tpu_custom_call.1} parent=1 // pred_fallthru
      _
    // Predicated region
    $region6: #{tpu_custom_call.1} parent=1 // pred_check
      _
    $region7: #{tpu_custom_call.1} parent=1 // pred_check_branch
      %41 = sbr.rel (0) target = $region9
    $region8: #{tpu_custom_call.1} parent=1 // pred_region
      _
    $region9: #{tpu_custom_call.1} parent=1 // pred_fallthru
      _
    // Predicated region
    $region10: #{tpu_custom_call.1} parent=1 // pred_check
      _
    $region11: #{tpu_custom_call.1} parent=1 // pred_check_branch
      %43 = sbr.rel (0) target = $region13
    $region12: #{tpu_custom_call.1} parent=1 // pred_region
      %s45 = ssub.s32 512, 512
      %46 = vsyncadd [#allocation8], %s45
      %s47 = sshll.u32 [#allocation7], 4
      %s48 = int_to_ptr.vmem [resolvable:$true] %s47
      %53 = dma.hbm_to_vmem [thread:$0]  %s2, 512, %s48, [#allocation8], 64, 64, 4
    $region13: #{tpu_custom_call.1} parent=1 // pred_fallthru
      _
    // Predicated region
    $region14: #{tpu_custom_call.1} parent=1 // pred_check
      _
    $region15: #{tpu_custom_call.1} parent=1 // pred_check_branch
      %55 = sbr.rel (0) target = $region17
    $region16: #{tpu_custom_call.1} parent=1 // pred_region
      %s57 = ssub.s32 192, 192
      %58 = vsyncadd [#allocation8], %s57
      %s59 = sshll.u32 [#allocation9], 4
      %s60 = int_to_ptr.vmem [resolvable:$true] %s59
      %65 = dma.hbm_to_vmem [thread:$0]  %s3, 192, %s60, [#allocation8], 64, 64, 4
    $region17: #{tpu_custom_call.1} parent=1 // pred_fallthru
      _
    // Predicated region
    $region18: #{tpu_custom_call.1} parent=1 // pred_check
      _
    $region19: #{tpu_custom_call.1} parent=1 // pred_check_branch
      %67 = sbr.rel (0) target = $region21
    $region20: #{tpu_custom_call.1} parent=1 // pred_region
      %s69 = ssub.s32 128, 128
      %70 = vsyncadd [#allocation11], %s69
      %s71 = sshll.u32 [#allocation10], 4
      %s72 = int_to_ptr.vmem [resolvable:$true] %s71
      %77 = dma.hbm_to_vmem [thread:$0]  %s4, 128, %s72, [#allocation11], 64, 64, 4
    $region21: #{tpu_custom_call.1} parent=1 // pred_fallthru
      _
    // Predicated region
    $region22: #{tpu_custom_call.1} parent=1 // pred_check
      _
    $region23: #{tpu_custom_call.1} parent=1 // pred_check_branch
      %79 = sbr.rel (0) target = $region25
    $region24: #{tpu_custom_call.1} parent=1 // pred_region
      %s81 = ssub.s32 2560, 2560
      %82 = vsyncadd [#allocation11], %s81
      %s83 = sshll.u32 [#allocation12], 4
      %s84 = int_to_ptr.vmem [resolvable:$true] %s83
      %89 = dma.hbm_to_vmem [thread:$0]  %s5, 2560, %s84, [#allocation11], 64, 64, 4
    $region25: #{tpu_custom_call.1} parent=1 // pred_fallthru
      _
    // Predicated region
    $region26: #{tpu_custom_call.1} parent=1 // pred_check
      _
    $region27: #{tpu_custom_call.1} parent=1 // pred_check_branch
      %91 = sbr.rel (0) target = $region29
    $region28: #{tpu_custom_call.1} parent=1 // pred_region
      _
    $region29: #{tpu_custom_call.1} parent=1 // pred_fallthru
      _
    // Predicated region
    $region30: #{tpu_custom_call.1} parent=1 // pred_check
      _
    $region31: #{tpu_custom_call.1} parent=1 // pred_check_branch
      %93 = sbr.rel (0) target = $region33
    $region32: #{tpu_custom_call.1} parent=1 // pred_region
      _
    $region33: #{tpu_custom_call.1} parent=1 // pred_fallthru
      _
    // Predicated region
    $region34: #{tpu_custom_call.1} parent=1 // pred_check
      _
    $region35: #{tpu_custom_call.1} parent=1 // pred_check_branch
      %95 = sbr.rel (0) target = $region37
    $region36: #{tpu_custom_call.1} parent=1 // pred_region
      %s97 = ssub.s32 64, 64
      %98 = vsyncadd [#allocation14], %s97
      %s100 = sshll.u32 [#allocation13], 4
      %s101 = int_to_ptr.vmem [resolvable:$true] %s100
      %103 = dma.hbm_to_vmem [thread:$0]  %s8, 64, %s101, [#allocation14]
    $region37: #{tpu_custom_call.1} parent=1 // pred_fallthru
      _
    // Predicated region
    $region38: #{tpu_custom_call.1} parent=1 // pred_check
      _
    $region39: #{tpu_custom_call.1} parent=1 // pred_check_branch
      %105 = sbr.rel (0) target = $region41
    $region40: #{tpu_custom_call.1} parent=1 // pred_region
      _
    $region41: #{tpu_custom_call.1} parent=1 // pred_fallthru
      _
    // Predicated region
    $region42: #{tpu_custom_call.1} parent=1 // pred_check
      _
    $region43: #{tpu_custom_call.1} parent=1 // pred_check_branch
      %107 = sbr.rel (0) target = $region45
    $region44: #{tpu_custom_call.1} parent=1 // pred_region
      _
    $region45: #{tpu_custom_call.1} parent=1 // pred_fallthru
      _
    // Predicated region
    $region46: #{tpu_custom_call.1} parent=1 // pred_check
      _
    $region47: #{tpu_custom_call.1} parent=1 // pred_check_branch
      %109 = sbr.rel (0) target = $region49
    $region48: #{tpu_custom_call.1} parent=1 // pred_region
      _
    $region49: #{tpu_custom_call.1} parent=1 // pred_fallthru
      _
    // Predicated region
    $region50: #{tpu_custom_call.1} parent=1 // pred_check
      _
    $region51: #{tpu_custom_call.1} parent=1 // pred_check_branch
      %111 = sbr.rel (0) target = $region53
    $region52: #{tpu_custom_call.1} parent=1 // pred_region
      _
    $region53: #{tpu_custom_call.1} parent=1 // pred_fallthru
      _
    // Predicated region
    $region54: #{tpu_custom_call.1} parent=1 // pred_check
      _
    $region55: #{tpu_custom_call.1} parent=1 // pred_check_branch
      %113 = sbr.rel (0) target = $region57
    $region56: #{tpu_custom_call.1} parent=1 // pred_region
      _
    $region57: #{tpu_custom_call.1} parent=1 // pred_fallthru
      _
    // Predicated region
    $region58: #{tpu_custom_call.1} parent=1 // pred_check
      _
    $region59: #{tpu_custom_call.1} parent=1 // pred_check_branch
      %115 = sbr.rel (0) target = $region61
    $region60: #{tpu_custom_call.1} parent=1 // pred_region
      _
    $region61: #{tpu_custom_call.1} parent=1 // pred_fallthru
      _
    // Predicated region
    $region62: #{tpu_custom_call.1} parent=1 // pred_check
      _
    $region63: #{tpu_custom_call.1} parent=1 // pred_check_branch
      %117 = sbr.rel (0) target = $region65
    $region64: #{tpu_custom_call.1} parent=1 // pred_region
      %118 = dma.done [#allocation5], 512
    $region65: #{tpu_custom_call.1} parent=1 // pred_fallthru
      _
    // Predicated region
    $region66: #{tpu_custom_call.1} parent=1 // pred_check
      _
    $region67: #{tpu_custom_call.1} parent=1 // pred_check_branch
      %120 = sbr.rel (0) target = $region69
    $region68: #{tpu_custom_call.1} parent=1 // pred_region
      %121 = dma.done [#allocation8], 512
    $region69: #{tpu_custom_call.1} parent=1 // pred_fallthru
      _
    // Predicated region
    $region70: #{tpu_custom_call.1} parent=1 // pred_check
      _
    $region71: #{tpu_custom_call.1} parent=1 // pred_check_branch
      %123 = sbr.rel (0) target = $region73
    $region72: #{tpu_custom_call.1} parent=1 // pred_region
      %124 = dma.done [#allocation8], 192
    $region73: #{tpu_custom_call.1} parent=1 // pred_fallthru
      _
    // Predicated region
    $region74: #{tpu_custom_call.1} parent=1 // pred_check
      _
    $region75: #{tpu_custom_call.1} parent=1 // pred_check_branch
      %126 = sbr.rel (0) target = $region77
    $region76: #{tpu_custom_call.1} parent=1 // pred_region
      %127 = dma.done [#allocation11], 128
    $region77: #{tpu_custom_call.1} parent=1 // pred_fallthru
      _
    // Predicated region
    $region78: #{tpu_custom_call.1} parent=1 // pred_check
      _
    $region79: #{tpu_custom_call.1} parent=1 // pred_check_branch
      %129 = sbr.rel (0) target = $region81
    $region80: #{tpu_custom_call.1} parent=1 // pred_region
      %130 = dma.done [#allocation11], 2560
    $region81: #{tpu_custom_call.1} parent=1 // pred_fallthru
      _
    // Predicated region
    $region82: #{tpu_custom_call.1} parent=1 // pred_check
      _
    $region83: #{tpu_custom_call.1} parent=1 // pred_check_branch
      %132 = sbr.rel (0) target = $region85
    $region84: #{tpu_custom_call.1} parent=1 // pred_region
      %133 = dma.done [#allocation14], 64
    $region85: #{tpu_custom_call.1} parent=1 // pred_fallthru
      _
    %p135 = scmp.eq.s32.totalorder 0, 0
    // Predicated region
    $region86: #{tpu_custom_call.1} parent=1 // pred_check
      %p136 = pneg %p135
    $region87: #{tpu_custom_call.1} parent=1 // pred_check_branch
      %138 = sbr.rel (%p136) target = $region89
    $region88: #{tpu_custom_call.1} parent=1 // pred_region
      %vm139 = vcmask 257024
      %140 = vst.msk [vmem:[#allocation2] sm:$0xf] %vm139, 0.0
      %141 = vst.msk [vmem:[#allocation3] sm:$0xf] %vm139, 0.0
      %vm142 = vcmask 0
      %143 = vst.msk [vmem:[#allocation16] sm:$0x1] %vm142, 0.0
    $region89: #{tpu_custom_call.1} parent=1 // pred_fallthru
      _
    %v144 = vld [vmem:[#allocation2] sm:$0xf]
    %v145 = vld [vmem:[#allocation3] sm:$0xf]
    loop: start=0, step=1, limit=8
    $region90: #{tpu_custom_call.1} parent=1 // loop_pre_header
      _
    $region91: #{tpu_custom_call.1} parent=1 // loop_header
      %s147 = sphi 0, %s151
      %p148 = scmp.ge.s32.totalorder %s147, 8
      %v152 = vphi %v144, %v1558
      %v153 = vphi 0.0, %v1555
    $region92: #{tpu_custom_call.1} parent=1 // loop_header_branch
      %150 = sbr.rel (%p148) target = $region96
    $region93: #{tpu_custom_call.1} parent=1 // loop_body
      %s154 = smul.u32 %s147, 4
      %s155 = scalar_lea.vmem [#allocation4], %s154
      %v156 = vld [vmem:[%s155] sm:$0xf]
      %v157 = vld [vmem:[%s13] sm:$0x1]
      %v158 = vld [vmem:[%s14] sm:$0x1]
      %v160 = vlaneseq
      %v161 = vshrl.u32 %v160, 7
      %v162 = vsub.s32 0, %v161
      %v163 = vrot.slane %v157, %v162
      %v165 = vsub.f32 %v156, %v163
      %v167 = vlaneseq
      %v168 = vshrl.u32 %v167, 7
      %v169 = vsub.s32 0, %v168
      %v170 = vrot.slane %v158, %v169
      %v172 = vrcp.pop %v170
      %v173 = vmul.f32 %v165, %v172
      %v174 = vld [vmem:[#allocation9] sm:$0xf]
      %v175 = vld [vmem:[#allocation9 + $0x4] sm:$0xf]
      %v176 = vld [vmem:[#allocation9 + $0x8] sm:$0xf]
      %v177 = vpack.c.bf16 %v173, %v173
      %v178 = vld [vmem:[%s7] sm:$0x1]
      %v179 = vlaneseq
      %v180 = vshrl.u32 %v179, 7
      %v181 = vsub.s32 0, %v180
      %v182 = vrot.slane %v178, %v181
      %v186 = vunpack.c.l.b16 %v174
      %v187 = vunpack.c.l.b16 %v175
      %v188 = vunpack.c.l.b16 %v176
      %v189 = vpack.c.b16 %v187, %v186
      %v190 = vpack.c.b16 %v188, %v188
      %vm192 = vcmask 195584
      %v194 = vsel %vm192, %v177, 0
      %vm196 = vcmask 1043456
      %v198 = vsel %vm196, %v190, 0
      %200 = vmatprep.subr.bf16.mxu0 0
      %201 = vmatpush1.bf16.msra.mxu0 0
      %202 = vmatprep.subr.bf16.mxu0 0
      %203 = vmatpush1.bf16.msra.mxu0 0
      %204 = vmatprep.subr.bf16.mxu0 0
      %205 = vmatpush1.bf16.msra.mxu0 0
      %206 = vmatprep.subr.bf16.mxu0 0
      %207 = vmatpush1.bf16.msra.mxu0 0
      %208 = vmatprep.subr.bf16.mxu0 0
      %209 = vmatpush1.bf16.msra.mxu0 0
      %210 = vmatprep.subr.bf16.mxu0 0
      %211 = vmatpush1.bf16.msra.mxu0 0
      %212 = vmatprep.subr.bf16.mxu0 0
      %213 = vmatpush1.bf16.msra.mxu0 %v198
      %214 = vmatprep.subr.bf16.mxu0 0
      %215 = vmatpush1.bf16.msra.mxu0 %v189
      %216 = vmatprep.subr.bf16.mxu0 0
      %217 = vmatpush2.bf16.msra.mxu0 0
      %218 = vmatprep.subr.bf16.mxu0 0
      %219 = vmatpush2.bf16.msra.mxu0 0
      %220 = vmatprep.subr.bf16.mxu0 0
      %221 = vmatpush2.bf16.msra.mxu0 0
      %222 = vmatprep.subr.bf16.mxu0 0
      %223 = vmatpush2.bf16.msra.mxu0 0
      %224 = vmatprep.subr.bf16.mxu0 0
      %225 = vmatpush2.bf16.msra.mxu0 0
      %226 = vmatprep.subr.bf16.mxu0 0
      %227 = vmatpush2.bf16.msra.mxu0 0
      %228 = vmatprep.subr.bf16.mxu0 0
      %229 = vmatpush2.bf16.msra.mxu0 0
      %230 = vmatprep.subr.bf16.mxu0 0
      %231 = vmatpush2.bf16.msra.mxu0 0
      %232 = vmatprep.mubr.bf16.mxu0 0
      %233 = vmatmul.mubr.bf16.gmra.mxu0 %v194
      %v234 = vpop.f32.mrf.mxu0
      %v235 = vadd.f32 %v182, %v234
      %v236 = vpop.f32.mrf.mxu0
      %v237 = vpop.f32.mrf.mxu0
      %v238 = vpop.f32.mrf.mxu0
      %239 = vdwg.mxu0
      %vm240 = vcmp.gt.f32.partialorder %v235, 0.0
      %v241 = vmin.f32 %v235, 0.0
      %v242 = vmul.f32 %v241, 1.442695
      %v243 = vpow.pop %v242
      %v244 = vsub.f32 %v243, 1.0
      %v245 = vsel %vm240, %v235, %v244
      %v246 = vld [vmem:[#allocation12] sm:$0xf]
      %v247 = vld [vmem:[#allocation12 + $0x4] sm:$0xf]
      %v248 = vld [vmem:[#allocation12 + $0x8] sm:$0xf]
      %v249 = vld [vmem:[#allocation12 + $0xc] sm:$0xf]
      %v250 = vpack.c.bf16 %v245, %v245
      %v251 = vld [vmem:[%s7 + $0x1] sm:$0x1]
      %v252 = vlaneseq
      %v253 = vshrl.u32 %v252, 7
      %v254 = vsub.s32 0, %v253
      %v255 = vrot.slane %v251, %v254
      %v260 = vunpack.c.l.b16 %v246
      %v261 = vunpack.c.l.b16 %v247
      %v262 = vunpack.c.l.b16 %v248
      %v263 = vunpack.c.l.b16 %v249
      %v264 = vpack.c.b16 %v261, %v260
      %v265 = vpack.c.b16 %v263, %v262
      %vm268 = vcmask 261120
      %v270 = vsel %vm268, %v250, 0
      %272 = vmatprep.subr.bf16.mxu0 0
      %273 = vmatpush1.bf16.msra.mxu0 0
      %274 = vmatprep.subr.bf16.mxu0 0
      %275 = vmatpush1.bf16.msra.mxu0 0
      %276 = vmatprep.subr.bf16.mxu0 0
      %277 = vmatpush1.bf16.msra.mxu0 0
      %278 = vmatprep.subr.bf16.mxu0 0
      %279 = vmatpush1.bf16.msra.mxu0 0
      %280 = vmatprep.subr.bf16.mxu0 0
      %281 = vmatpush1.bf16.msra.mxu0 0
      %282 = vmatprep.subr.bf16.mxu0 0
      %283 = vmatpush1.bf16.msra.mxu0 0
      %284 = vmatprep.subr.bf16.mxu0 0
      %285 = vmatpush1.bf16.msra.mxu0 %v265
      %286 = vmatprep.subr.bf16.mxu0 0
      %287 = vmatpush1.bf16.msra.mxu0 %v264
      %288 = vmatprep.subr.bf16.mxu0 0
      %289 = vmatpush2.bf16.msra.mxu0 0
      %290 = vmatprep.subr.bf16.mxu0 0
      %291 = vmatpush2.bf16.msra.mxu0 0
      %292 = vmatprep.subr.bf16.mxu0 0
      %293 = vmatpush2.bf16.msra.mxu0 0
      %294 = vmatprep.subr.bf16.mxu0 0
      %295 = vmatpush2.bf16.msra.mxu0 0
      %296 = vmatprep.subr.bf16.mxu0 0
      %297 = vmatpush2.bf16.msra.mxu0 0
      %298 = vmatprep.subr.bf16.mxu0 0
      %299 = vmatpush2.bf16.msra.mxu0 0
      %300 = vmatprep.subr.bf16.mxu0 0
      %301 = vmatpush2.bf16.msra.mxu0 0
      %302 = vmatprep.subr.bf16.mxu0 0
      %303 = vmatpush2.bf16.msra.mxu0 0
      %304 = vmatprep.mubr.bf16.mxu0 0
      %305 = vmatmul.mubr.bf16.gmra.mxu0 %v270
      %v306 = vpop.f32.mrf.mxu0
      %v307 = vadd.f32 %v255, %v306
      %v308 = vpop.f32.mrf.mxu0
      %v309 = vpop.f32.mrf.mxu0
      %v310 = vpop.f32.mrf.mxu0
      %311 = vdwg.mxu0
      %vm312 = vcmp.gt.f32.partialorder %v307, 0.0
      %v313 = vmin.f32 %v307, 0.0
      %v314 = vmul.f32 %v313, 1.442695
      %v315 = vpow.pop %v314
      %v316 = vsub.f32 %v315, 1.0
      %v317 = vsel %vm312, %v307, %v316
      %s318 = scalar_lea.vmem [#allocation12], 16
      %v319 = vld [vmem:[%s318] sm:$0xf]
      %v320 = vld [vmem:[%s318 + $0x4] sm:$0xf]
      %v321 = vld [vmem:[%s318 + $0x8] sm:$0xf]
      %v322 = vld [vmem:[%s318 + $0xc] sm:$0xf]
      %v323 = vpack.c.bf16 %v317, %v317
      %v324 = vld [vmem:[%s7 + $0x2] sm:$0x1]
      %v325 = vlaneseq
      %v326 = vshrl.u32 %v325, 7
      %v327 = vsub.s32 0, %v326
      %v328 = vrot.slane %v324, %v327
      %v333 = vunpack.c.l.b16 %v319
      %v334 = vunpack.c.l.b16 %v320
      %v335 = vunpack.c.l.b16 %v321
      %v336 = vunpack.c.l.b16 %v322
      %v337 = vpack.c.b16 %v334, %v333
      %v338 = vpack.c.b16 %v336, %v335
      %v342 = vsel %vm268, %v323, 0
      %344 = vmatprep.subr.bf16.mxu0 0
      %345 = vmatpush1.bf16.msra.mxu0 0
      %346 = vmatprep.subr.bf16.mxu0 0
      %347 = vmatpush1.bf16.msra.mxu0 0
      %348 = vmatprep.subr.bf16.mxu0 0
      %349 = vmatpush1.bf16.msra.mxu0 0
      %350 = vmatprep.subr.bf16.mxu0 0
      %351 = vmatpush1.bf16.msra.mxu0 0
      %352 = vmatprep.subr.bf16.mxu0 0
      %353 = vmatpush1.bf16.msra.mxu0 0
      %354 = vmatprep.subr.bf16.mxu0 0
      %355 = vmatpush1.bf16.msra.mxu0 0
      %356 = vmatprep.subr.bf16.mxu0 0
      %357 = vmatpush1.bf16.msra.mxu0 %v338
      %358 = vmatprep.subr.bf16.mxu0 0
      %359 = vmatpush1.bf16.msra.mxu0 %v337
      %360 = vmatprep.subr.bf16.mxu0 0
      %361 = vmatpush2.bf16.msra.mxu0 0
      %362 = vmatprep.subr.bf16.mxu0 0
      %363 = vmatpush2.bf16.msra.mxu0 0
      %364 = vmatprep.subr.bf16.mxu0 0
      %365 = vmatpush2.bf16.msra.mxu0 0
      %366 = vmatprep.subr.bf16.mxu0 0
      %367 = vmatpush2.bf16.msra.mxu0 0
      %368 = vmatprep.subr.bf16.mxu0 0
      %369 = vmatpush2.bf16.msra.mxu0 0
      %370 = vmatprep.subr.bf16.mxu0 0
      %371 = vmatpush2.bf16.msra.mxu0 0
      %372 = vmatprep.subr.bf16.mxu0 0
      %373 = vmatpush2.bf16.msra.mxu0 0
      %374 = vmatprep.subr.bf16.mxu0 0
      %375 = vmatpush2.bf16.msra.mxu0 0
      %376 = vmatprep.mubr.bf16.mxu0 0
      %377 = vmatmul.mubr.bf16.gmra.mxu0 %v342
      %v378 = vpop.f32.mrf.mxu0
      %v379 = vadd.f32 %v328, %v378
      %v380 = vpop.f32.mrf.mxu0
      %v381 = vpop.f32.mrf.mxu0
      %v382 = vpop.f32.mrf.mxu0
      %383 = vdwg.mxu0
      %vm384 = vcmp.gt.f32.partialorder %v379, 0.0
      %v385 = vmin.f32 %v379, 0.0
      %v386 = vmul.f32 %v385, 1.442695
      %v387 = vpow.pop %v386
      %v388 = vsub.f32 %v387, 1.0
      %v389 = vsel %vm384, %v379, %v388
      %v390 = vld [vmem:[%s6] sm:$0xf]
      %v391 = vld [vmem:[%s6 + $0x4] sm:$0xf]
      %v392 = vld [vmem:[%s6 + $0x8] sm:$0xf]
      %v393 = vld [vmem:[%s6 + $0xc] sm:$0xf]
      %v394 = vpack.c.bf16 %v152, %v152
      %v395 = vld [vmem:[#allocation13] sm:$0x1]
      %v396 = vlaneseq
      %v397 = vshrl.u32 %v396, 7
      %v398 = vsub.s32 0, %v397
      %v399 = vrot.slane %v395, %v398
      %v404 = vunpack.c.l.b16 %v390
      %v405 = vunpack.c.l.b16 %v391
      %v406 = vunpack.c.l.b16 %v392
      %v407 = vunpack.c.l.b16 %v393
      %v408 = vpack.c.b16 %v405, %v404
      %v409 = vpack.c.b16 %v407, %v406
      %v413 = vsel %vm268, %v394, 0
      %415 = vmatprep.subr.bf16.mxu0 0
      %416 = vmatpush1.bf16.msra.mxu0 0
      %417 = vmatprep.subr.bf16.mxu0 0
      %418 = vmatpush1.bf16.msra.mxu0 0
      %419 = vmatprep.subr.bf16.mxu0 0
      %420 = vmatpush1.bf16.msra.mxu0 0
      %421 = vmatprep.subr.bf16.mxu0 0
      %422 = vmatpush1.bf16.msra.mxu0 0
      %423 = vmatprep.subr.bf16.mxu0 0
      %424 = vmatpush1.bf16.msra.mxu0 0
      %425 = vmatprep.subr.bf16.mxu0 0
      %426 = vmatpush1.bf16.msra.mxu0 0
      %427 = vmatprep.subr.bf16.mxu0 0
      %428 = vmatpush1.bf16.msra.mxu0 %v409
      %429 = vmatprep.subr.bf16.mxu0 0
      %430 = vmatpush1.bf16.msra.mxu0 %v408
      %431 = vmatprep.subr.bf16.mxu0 0
      %432 = vmatpush2.bf16.msra.mxu0 0
      %433 = vmatprep.subr.bf16.mxu0 0
      %434 = vmatpush2.bf16.msra.mxu0 0
      %435 = vmatprep.subr.bf16.mxu0 0
      %436 = vmatpush2.bf16.msra.mxu0 0
      %437 = vmatprep.subr.bf16.mxu0 0
      %438 = vmatpush2.bf16.msra.mxu0 0
      %439 = vmatprep.subr.bf16.mxu0 0
      %440 = vmatpush2.bf16.msra.mxu0 0
      %441 = vmatprep.subr.bf16.mxu0 0
      %442 = vmatpush2.bf16.msra.mxu0 0
      %443 = vmatprep.subr.bf16.mxu0 0
      %444 = vmatpush2.bf16.msra.mxu0 0
      %445 = vmatprep.subr.bf16.mxu0 0
      %446 = vmatpush2.bf16.msra.mxu0 0
      %447 = vmatprep.mubr.bf16.mxu0 0
      %448 = vmatmul.mubr.bf16.gmra.mxu0 %v413
      %v449 = vpop.f32.mrf.mxu0
      %v450 = vadd.f32 %v399, %v449
      %v451 = vpop.f32.mrf.mxu0
      %v452 = vpop.f32.mrf.mxu0
      %v453 = vpop.f32.mrf.mxu0
      %454 = vdwg.mxu0
      %s455 = scalar_lea.vmem [#allocation12], 64
      %v456 = vld [vmem:[%s455] sm:$0xf]
      %v457 = vld [vmem:[%s455 + $0x4] sm:$0xf]
      %v458 = vld [vmem:[%s455 + $0x8] sm:$0xf]
      %v459 = vld [vmem:[%s455 + $0xc] sm:$0xf]
      %v460 = vpack.c.bf16 %v389, %v389
      %v465 = vunpack.c.l.b16 %v456
      %v466 = vunpack.c.l.b16 %v457
      %v467 = vunpack.c.l.b16 %v458
      %v468 = vunpack.c.l.b16 %v459
      %v469 = vpack.c.b16 %v466, %v465
      %v470 = vpack.c.b16 %v468, %v467
      %v474 = vsel %vm268, %v460, 0
      %476 = vmatprep.subr.bf16.mxu0 0
      %477 = vmatpush1.bf16.msra.mxu0 0
      %478 = vmatprep.subr.bf16.mxu0 0
      %479 = vmatpush1.bf16.msra.mxu0 0
      %480 = vmatprep.subr.bf16.mxu0 0
      %481 = vmatpush1.bf16.msra.mxu0 0
      %482 = vmatprep.subr.bf16.mxu0 0
      %483 = vmatpush1.bf16.msra.mxu0 0
      %484 = vmatprep.subr.bf16.mxu0 0
      %485 = vmatpush1.bf16.msra.mxu0 0
      %486 = vmatprep.subr.bf16.mxu0 0
      %487 = vmatpush1.bf16.msra.mxu0 0
      %488 = vmatprep.subr.bf16.mxu0 0
      %489 = vmatpush1.bf16.msra.mxu0 %v470
      %490 = vmatprep.subr.bf16.mxu0 0
      %491 = vmatpush1.bf16.msra.mxu0 %v469
      %492 = vmatprep.subr.bf16.mxu0 0
      %493 = vmatpush2.bf16.msra.mxu0 0
      %494 = vmatprep.subr.bf16.mxu0 0
      %495 = vmatpush2.bf16.msra.mxu0 0
      %496 = vmatprep.subr.bf16.mxu0 0
      %497 = vmatpush2.bf16.msra.mxu0 0
      %498 = vmatprep.subr.bf16.mxu0 0
      %499 = vmatpush2.bf16.msra.mxu0 0
      %500 = vmatprep.subr.bf16.mxu0 0
      %501 = vmatpush2.bf16.msra.mxu0 0
      %502 = vmatprep.subr.bf16.mxu0 0
      %503 = vmatpush2.bf16.msra.mxu0 0
      %504 = vmatprep.subr.bf16.mxu0 0
      %505 = vmatpush2.bf16.msra.mxu0 0
      %506 = vmatprep.subr.bf16.mxu0 0
      %507 = vmatpush2.bf16.msra.mxu0 0
      %508 = vmatprep.mubr.bf16.mxu0 0
      %509 = vmatmul.mubr.bf16.gmra.mxu0 %v474
      %v510 = vpop.f32.mrf.mxu0
      %v511 = vadd.f32 %v450, %v510
      %v512 = vpop.f32.mrf.mxu0
      %v513 = vpop.f32.mrf.mxu0
      %v514 = vpop.f32.mrf.mxu0
      %515 = vdwg.mxu0
      %vm516 = vcmp.gt.f32.partialorder %v511, 0.0
      %v517 = vmin.f32 %v511, 0.0
      %v518 = vmul.f32 %v517, 1.442695
      %v519 = vpow.pop %v518
      %v520 = vsub.f32 %v519, 1.0
      %v521 = vsel %vm516, %v511, %v520
      %s522 = scalar_lea.vmem [#allocation12], 80
      %v523 = vld [vmem:[%s522] sm:$0xf]
      %v524 = vld [vmem:[%s522 + $0x4] sm:$0xf]
      %v525 = vld [vmem:[%s522 + $0x8] sm:$0xf]
      %v526 = vld [vmem:[%s522 + $0xc] sm:$0xf]
      %v527 = vpack.c.bf16 %v521, %v521
      %v528 = vld [vmem:[%s7 + $0x6] sm:$0x1]
      %v529 = vlaneseq
      %v530 = vshrl.u32 %v529, 7
      %v531 = vsub.s32 0, %v530
      %v532 = vrot.slane %v528, %v531
      %v537 = vunpack.c.l.b16 %v523
      %v538 = vunpack.c.l.b16 %v524
      %v539 = vunpack.c.l.b16 %v525
      %v540 = vunpack.c.l.b16 %v526
      %v541 = vpack.c.b16 %v538, %v537
      %v542 = vpack.c.b16 %v540, %v539
      %v546 = vsel %vm268, %v527, 0
      %548 = vmatprep.subr.bf16.mxu0 0
      %549 = vmatpush1.bf16.msra.mxu0 0
      %550 = vmatprep.subr.bf16.mxu0 0
      %551 = vmatpush1.bf16.msra.mxu0 0
      %552 = vmatprep.subr.bf16.mxu0 0
      %553 = vmatpush1.bf16.msra.mxu0 0
      %554 = vmatprep.subr.bf16.mxu0 0
      %555 = vmatpush1.bf16.msra.mxu0 0
      %556 = vmatprep.subr.bf16.mxu0 0
      %557 = vmatpush1.bf16.msra.mxu0 0
      %558 = vmatprep.subr.bf16.mxu0 0
      %559 = vmatpush1.bf16.msra.mxu0 0
      %560 = vmatprep.subr.bf16.mxu0 0
      %561 = vmatpush1.bf16.msra.mxu0 %v542
      %562 = vmatprep.subr.bf16.mxu0 0
      %563 = vmatpush1.bf16.msra.mxu0 %v541
      %564 = vmatprep.subr.bf16.mxu0 0
      %565 = vmatpush2.bf16.msra.mxu0 0
      %566 = vmatprep.subr.bf16.mxu0 0
      %567 = vmatpush2.bf16.msra.mxu0 0
      %568 = vmatprep.subr.bf16.mxu0 0
      %569 = vmatpush2.bf16.msra.mxu0 0
      %570 = vmatprep.subr.bf16.mxu0 0
      %571 = vmatpush2.bf16.msra.mxu0 0
      %572 = vmatprep.subr.bf16.mxu0 0
      %573 = vmatpush2.bf16.msra.mxu0 0
      %574 = vmatprep.subr.bf16.mxu0 0
      %575 = vmatpush2.bf16.msra.mxu0 0
      %576 = vmatprep.subr.bf16.mxu0 0
      %577 = vmatpush2.bf16.msra.mxu0 0
      %578 = vmatprep.subr.bf16.mxu0 0
      %579 = vmatpush2.bf16.msra.mxu0 0
      %580 = vmatprep.mubr.bf16.mxu0 0
      %581 = vmatmul.mubr.bf16.gmra.mxu0 %v546
      %v582 = vpop.f32.mrf.mxu0
      %v583 = vadd.f32 %v532, %v582
      %v584 = vpop.f32.mrf.mxu0
      %v585 = vpop.f32.mrf.mxu0
      %v586 = vpop.f32.mrf.mxu0
      %587 = vdwg.mxu0
      %vm588 = vcmp.gt.f32.partialorder %v583, 0.0
      %v589 = vmin.f32 %v583, 0.0
      %v590 = vmul.f32 %v589, 1.442695
      %v591 = vpow.pop %v590
      %v592 = vsub.f32 %v591, 1.0
      %v593 = vsel %vm588, %v583, %v592
      %v594 = vld [vmem:[%s9] sm:$0xf]
      %v595 = vld [vmem:[%s9 + $0x4] sm:$0xf]
      %v596 = vld [vmem:[%s9 + $0x8] sm:$0xf]
      %v597 = vld [vmem:[%s9 + $0xc] sm:$0xf]
      %v598 = vpack.c.bf16 %v593, %v593
      %v599 = vld [vmem:[%s10] sm:$0x1]
      %v600 = vlaneseq
      %v601 = vshrl.u32 %v600, 7
      %v602 = vsub.s32 0, %v601
      %v603 = vrot.slane %v599, %v602
      %v608 = vunpack.c.l.b16 %v594
      %v609 = vunpack.c.l.b16 %v595
      %v610 = vunpack.c.l.b16 %v596
      %v611 = vunpack.c.l.b16 %v597
      %v612 = vpack.c.b16 %v609, %v608
      %v613 = vpack.c.b16 %v611, %v610
      %v617 = vsel %vm268, %v598, 0
      %619 = vmatprep.subr.bf16.mxu0 0
      %620 = vmatpush1.bf16.msra.mxu0 0
      %621 = vmatprep.subr.bf16.mxu0 0
      %622 = vmatpush1.bf16.msra.mxu0 0
      %623 = vmatprep.subr.bf16.mxu0 0
      %624 = vmatpush1.bf16.msra.mxu0 0
      %625 = vmatprep.subr.bf16.mxu0 0
      %626 = vmatpush1.bf16.msra.mxu0 0
      %627 = vmatprep.subr.bf16.mxu0 0
      %628 = vmatpush1.bf16.msra.mxu0 0
      %629 = vmatprep.subr.bf16.mxu0 0
      %630 = vmatpush1.bf16.msra.mxu0 0
      %631 = vmatprep.subr.bf16.mxu0 0
      %632 = vmatpush1.bf16.msra.mxu0 %v613
      %633 = vmatprep.subr.bf16.mxu0 0
      %634 = vmatpush1.bf16.msra.mxu0 %v612
      %635 = vmatprep.subr.bf16.mxu0 0
      %636 = vmatpush2.bf16.msra.mxu0 0
      %637 = vmatprep.subr.bf16.mxu0 0
      %638 = vmatpush2.bf16.msra.mxu0 0
      %639 = vmatprep.subr.bf16.mxu0 0
      %640 = vmatpush2.bf16.msra.mxu0 0
      %641 = vmatprep.subr.bf16.mxu0 0
      %642 = vmatpush2.bf16.msra.mxu0 0
      %643 = vmatprep.subr.bf16.mxu0 0
      %644 = vmatpush2.bf16.msra.mxu0 0
      %645 = vmatprep.subr.bf16.mxu0 0
      %646 = vmatpush2.bf16.msra.mxu0 0
      %647 = vmatprep.subr.bf16.mxu0 0
      %648 = vmatpush2.bf16.msra.mxu0 0
      %649 = vmatprep.subr.bf16.mxu0 0
      %650 = vmatpush2.bf16.msra.mxu0 0
      %651 = vmatprep.mubr.bf16.mxu0 0
      %652 = vmatmul.mubr.bf16.gmra.mxu0 %v617
      %v653 = vpop.f32.mrf.mxu0
      %v654 = vadd.f32 %v603, %v653
      %v655 = vpop.f32.mrf.mxu0
      %v656 = vpop.f32.mrf.mxu0
      %v657 = vpop.f32.mrf.mxu0
      %658 = vdwg.mxu0
      %v659 = vsub.f32 0.0, %v654
      %v660 = vmul.f32 %v659, 1.442695
      %v661 = vpow.pop %v660
      %v662 = vadd.f32 %v661, 1.0
      %v663 = vrcp.pop %v662
      %v664 = vmul.f32 1.0, %v663
      %vm665 = vcmp.gt.f32.partialorder %v450, 0.0
      %v666 = vmin.f32 %v450, 0.0
      %v667 = vmul.f32 %v666, 1.442695
      %v668 = vpow.pop %v667
      %v669 = vsub.f32 %v668, 1.0
      %v670 = vsel %vm665, %v450, %v669
      %s671 = scalar_lea.vmem [#allocation12], 96
      %v672 = vld [vmem:[%s671] sm:$0xf]
      %v673 = vld [vmem:[%s671 + $0x4] sm:$0xf]
      %v674 = vld [vmem:[%s671 + $0x8] sm:$0xf]
      %v675 = vld [vmem:[%s671 + $0xc] sm:$0xf]
      %v676 = vpack.c.bf16 %v670, %v670
      %v677 = vld [vmem:[%s7 + $0x7] sm:$0x1]
      %v678 = vlaneseq
      %v679 = vshrl.u32 %v678, 7
      %v680 = vsub.s32 0, %v679
      %v681 = vrot.slane %v677, %v680
      %683 = vrot.lane.b32.xlu0 %v676, 96
      %v684 = vpop.permute.xlu0 %683
      %v689 = vunpack.c.l.b16 %v672
      %v690 = vunpack.c.l.b16 %v673
      %v691 = vunpack.c.l.b16 %v674
      %v692 = vunpack.c.l.b16 %v675
      %v693 = vpack.c.b16 %v690, %v689
      %v694 = vpack.c.b16 %v692, %v691
      %v698 = vsel %vm268, %v684, 0
      %700 = vmatprep.subr.bf16.mxu0 0
      %701 = vmatpush1.bf16.msra.mxu0 0
      %702 = vmatprep.subr.bf16.mxu0 0
      %703 = vmatpush1.bf16.msra.mxu0 0
      %704 = vmatprep.subr.bf16.mxu0 0
      %705 = vmatpush1.bf16.msra.mxu0 0
      %706 = vmatprep.subr.bf16.mxu0 0
      %707 = vmatpush1.bf16.msra.mxu0 0
      %708 = vmatprep.subr.bf16.mxu0 0
      %709 = vmatpush1.bf16.msra.mxu0 0
      %710 = vmatprep.subr.bf16.mxu0 0
      %711 = vmatpush1.bf16.msra.mxu0 0
      %712 = vmatprep.subr.bf16.mxu0 0
      %713 = vmatpush1.bf16.msra.mxu0 %v694
      %714 = vmatprep.subr.bf16.mxu0 0
      %715 = vmatpush1.bf16.msra.mxu0 %v693
      %716 = vmatprep.subr.bf16.mxu0 0
      %717 = vmatpush2.bf16.msra.mxu0 0
      %718 = vmatprep.subr.bf16.mxu0 0
      %719 = vmatpush2.bf16.msra.mxu0 0
      %720 = vmatprep.subr.bf16.mxu0 0
      %721 = vmatpush2.bf16.msra.mxu0 0
      %722 = vmatprep.subr.bf16.mxu0 0
      %723 = vmatpush2.bf16.msra.mxu0 0
      %724 = vmatprep.subr.bf16.mxu0 0
      %725 = vmatpush2.bf16.msra.mxu0 0
      %726 = vmatprep.subr.bf16.mxu0 0
      %727 = vmatpush2.bf16.msra.mxu0 0
      %728 = vmatprep.subr.bf16.mxu0 0
      %729 = vmatpush2.bf16.msra.mxu0 0
      %730 = vmatprep.subr.bf16.mxu0 0
      %731 = vmatpush2.bf16.msra.mxu0 0
      %732 = vmatprep.mubr.bf16.mxu0 0
      %733 = vmatmul.mubr.bf16.gmra.mxu0 %v698
      %v734 = vpop.f32.mrf.mxu0
      %v735 = vadd.f32 %v681, %v734
      %v736 = vpop.f32.mrf.mxu0
      %v737 = vpop.f32.mrf.mxu0
      %v738 = vpop.f32.mrf.mxu0
      %739 = vdwg.mxu0
      %vm740 = vcmp.gt.f32.partialorder %v735, 0.0
      %v741 = vmin.f32 %v735, 0.0
      %v742 = vmul.f32 %v741, 1.442695
      %v743 = vpow.pop %v742
      %v744 = vsub.f32 %v743, 1.0
      %v745 = vsel %vm740, %v735, %v744
      %s746 = scalar_lea.vmem %s9, 16
      %v747 = vld [vmem:[%s746] sm:$0xf]
      %v748 = vld [vmem:[%s746 + $0x4] sm:$0xf]
      %v749 = vld [vmem:[%s746 + $0x8] sm:$0xf]
      %v750 = vld [vmem:[%s746 + $0xc] sm:$0xf]
      %v751 = vpack.c.bf16 %v745, %v745
      %v752 = vld [vmem:[%s10 + $0x1] sm:$0x1]
      %v753 = vlaneseq
      %v754 = vshrl.u32 %v753, 7
      %v755 = vsub.s32 0, %v754
      %v756 = vrot.slane %v752, %v755
      %v761 = vunpack.c.l.b16 %v747
      %v762 = vunpack.c.l.b16 %v748
      %v763 = vunpack.c.l.b16 %v749
      %v764 = vunpack.c.l.b16 %v750
      %v765 = vpack.c.b16 %v762, %v761
      %v766 = vpack.c.b16 %v764, %v763
      %v770 = vsel %vm268, %v751, 0
      %772 = vmatprep.subr.bf16.mxu0 0
      %773 = vmatpush1.bf16.msra.mxu0 0
      %774 = vmatprep.subr.bf16.mxu0 0
      %775 = vmatpush1.bf16.msra.mxu0 0
      %776 = vmatprep.subr.bf16.mxu0 0
      %777 = vmatpush1.bf16.msra.mxu0 0
      %778 = vmatprep.subr.bf16.mxu0 0
      %779 = vmatpush1.bf16.msra.mxu0 0
      %780 = vmatprep.subr.bf16.mxu0 0
      %781 = vmatpush1.bf16.msra.mxu0 0
      %782 = vmatprep.subr.bf16.mxu0 0
      %783 = vmatpush1.bf16.msra.mxu0 0
      %784 = vmatprep.subr.bf16.mxu0 0
      %785 = vmatpush1.bf16.msra.mxu0 %v766
      %786 = vmatprep.subr.bf16.mxu0 0
      %787 = vmatpush1.bf16.msra.mxu0 %v765
      %788 = vmatprep.subr.bf16.mxu0 0
      %789 = vmatpush2.bf16.msra.mxu0 0
      %790 = vmatprep.subr.bf16.mxu0 0
      %791 = vmatpush2.bf16.msra.mxu0 0
      %792 = vmatprep.subr.bf16.mxu0 0
      %793 = vmatpush2.bf16.msra.mxu0 0
      %794 = vmatprep.subr.bf16.mxu0 0
      %795 = vmatpush2.bf16.msra.mxu0 0
      %796 = vmatprep.subr.bf16.mxu0 0
      %797 = vmatpush2.bf16.msra.mxu0 0
      %798 = vmatprep.subr.bf16.mxu0 0
      %799 = vmatpush2.bf16.msra.mxu0 0
      %800 = vmatprep.subr.bf16.mxu0 0
      %801 = vmatpush2.bf16.msra.mxu0 0
      %802 = vmatprep.subr.bf16.mxu0 0
      %803 = vmatpush2.bf16.msra.mxu0 0
      %804 = vmatprep.mubr.bf16.mxu0 0
      %805 = vmatmul.mubr.bf16.gmra.mxu0 %v770
      %v806 = vpop.f32.mrf.mxu0
      %v807 = vadd.f32 %v756, %v806
      %v808 = vpop.f32.mrf.mxu0
      %v809 = vpop.f32.mrf.mxu0
      %v810 = vpop.f32.mrf.mxu0
      %811 = vdwg.mxu0
      %v812 = vsub.f32 0.0, %v807
      %v813 = vmul.f32 %v812, 1.442695
      %v814 = vpow.pop %v813
      %v815 = vadd.f32 %v814, 1.0
      %v816 = vrcp.pop %v815
      %v817 = vmul.f32 1.0, %v816
      %v818 = vadd.f32 %v664, 0.5
      %v819 = vfloor.f32 %v818
      %v820 = vld [vmem:[#allocation10] sm:$0xf]
      %v821 = vld [vmem:[#allocation10 + $0x4] sm:$0xf]
      %v822 = vpack.c.bf16 %v819, %v819
      %v823 = vld [vmem:[%s7 + $0x3] sm:$0x1]
      %v824 = vlaneseq
      %v825 = vshrl.u32 %v824, 7
      %v826 = vsub.s32 0, %v825
      %v827 = vrot.slane %v823, %v826
      %v830 = vunpack.c.l.b16 %v820
      %v831 = vunpack.c.l.b16 %v821
      %v832 = vpack.c.b16 %v831, %v830
      %vm834 = vcmask 130048
      %v836 = vsel %vm834, %v822, 0
      %838 = vmatprep.subr.bf16.mxu0 0
      %839 = vmatpush1.bf16.msra.mxu0 0
      %840 = vmatprep.subr.bf16.mxu0 0
      %841 = vmatpush1.bf16.msra.mxu0 0
      %842 = vmatprep.subr.bf16.mxu0 0
      %843 = vmatpush1.bf16.msra.mxu0 0
      %844 = vmatprep.subr.bf16.mxu0 0
      %845 = vmatpush1.bf16.msra.mxu0 0
      %846 = vmatprep.subr.bf16.mxu0 0
      %847 = vmatpush1.bf16.msra.mxu0 0
      %848 = vmatprep.subr.bf16.mxu0 0
      %849 = vmatpush1.bf16.msra.mxu0 0
      %850 = vmatprep.subr.bf16.mxu0 0
      %851 = vmatpush1.bf16.msra.mxu0 0
      %852 = vmatprep.subr.bf16.mxu0 0
      %853 = vmatpush1.bf16.msra.mxu0 %v832
      %854 = vmatprep.subr.bf16.mxu0 0
      %855 = vmatpush2.bf16.msra.mxu0 0
      %856 = vmatprep.subr.bf16.mxu0 0
      %857 = vmatpush2.bf16.msra.mxu0 0
      %858 = vmatprep.subr.bf16.mxu0 0
      %859 = vmatpush2.bf16.msra.mxu0 0
      %860 = vmatprep.subr.bf16.mxu0 0
      %861 = vmatpush2.bf16.msra.mxu0 0
      %862 = vmatprep.subr.bf16.mxu0 0
      %863 = vmatpush2.bf16.msra.mxu0 0
      %864 = vmatprep.subr.bf16.mxu0 0
      %865 = vmatpush2.bf16.msra.mxu0 0
      %866 = vmatprep.subr.bf16.mxu0 0
      %867 = vmatpush2.bf16.msra.mxu0 0
      %868 = vmatprep.subr.bf16.mxu0 0
      %869 = vmatpush2.bf16.msra.mxu0 0
      %870 = vmatprep.mubr.bf16.mxu0 0
      %871 = vmatmul.mubr.bf16.gmra.mxu0 %v836
      %v872 = vpop.f32.mrf.mxu0
      %v873 = vadd.f32 %v827, %v872
      %v874 = vpop.f32.mrf.mxu0
      %v875 = vpop.f32.mrf.mxu0
      %v876 = vpop.f32.mrf.mxu0
      %877 = vdwg.mxu0
      %vm878 = vcmp.gt.f32.partialorder %v873, 0.0
      %v879 = vmin.f32 %v873, 0.0
      %v880 = vmul.f32 %v879, 1.442695
      %v881 = vpow.pop %v880
      %v882 = vsub.f32 %v881, 1.0
      %v883 = vsel %vm878, %v873, %v882
      %s884 = scalar_lea.vmem [#allocation12], 32
      %v885 = vld [vmem:[%s884] sm:$0xf]
      %v886 = vld [vmem:[%s884 + $0x4] sm:$0xf]
      %v887 = vld [vmem:[%s884 + $0x8] sm:$0xf]
      %v888 = vld [vmem:[%s884 + $0xc] sm:$0xf]
      %v889 = vpack.c.bf16 %v883, %v883
      %v890 = vld [vmem:[%s7 + $0x4] sm:$0x1]
      %v891 = vlaneseq
      %v892 = vshrl.u32 %v891, 7
      %v893 = vsub.s32 0, %v892
      %v894 = vrot.slane %v890, %v893
      %v899 = vunpack.c.l.b16 %v885
      %v900 = vunpack.c.l.b16 %v886
      %v901 = vunpack.c.l.b16 %v887
      %v902 = vunpack.c.l.b16 %v888
      %v903 = vpack.c.b16 %v900, %v899
      %v904 = vpack.c.b16 %v902, %v901
      %v908 = vsel %vm268, %v889, 0
      %910 = vmatprep.subr.bf16.mxu0 0
      %911 = vmatpush1.bf16.msra.mxu0 0
      %912 = vmatprep.subr.bf16.mxu0 0
      %913 = vmatpush1.bf16.msra.mxu0 0
      %914 = vmatprep.subr.bf16.mxu0 0
      %915 = vmatpush1.bf16.msra.mxu0 0
      %916 = vmatprep.subr.bf16.mxu0 0
      %917 = vmatpush1.bf16.msra.mxu0 0
      %918 = vmatprep.subr.bf16.mxu0 0
      %919 = vmatpush1.bf16.msra.mxu0 0
      %920 = vmatprep.subr.bf16.mxu0 0
      %921 = vmatpush1.bf16.msra.mxu0 0
      %922 = vmatprep.subr.bf16.mxu0 0
      %923 = vmatpush1.bf16.msra.mxu0 %v904
      %924 = vmatprep.subr.bf16.mxu0 0
      %925 = vmatpush1.bf16.msra.mxu0 %v903
      %926 = vmatprep.subr.bf16.mxu0 0
      %927 = vmatpush2.bf16.msra.mxu0 0
      %928 = vmatprep.subr.bf16.mxu0 0
      %929 = vmatpush2.bf16.msra.mxu0 0
      %930 = vmatprep.subr.bf16.mxu0 0
      %931 = vmatpush2.bf16.msra.mxu0 0
      %932 = vmatprep.subr.bf16.mxu0 0
      %933 = vmatpush2.bf16.msra.mxu0 0
      %934 = vmatprep.subr.bf16.mxu0 0
      %935 = vmatpush2.bf16.msra.mxu0 0
      %936 = vmatprep.subr.bf16.mxu0 0
      %937 = vmatpush2.bf16.msra.mxu0 0
      %938 = vmatprep.subr.bf16.mxu0 0
      %939 = vmatpush2.bf16.msra.mxu0 0
      %940 = vmatprep.subr.bf16.mxu0 0
      %941 = vmatpush2.bf16.msra.mxu0 0
      %942 = vmatprep.mubr.bf16.mxu0 0
      %943 = vmatmul.mubr.bf16.gmra.mxu0 %v908
      %v944 = vpop.f32.mrf.mxu0
      %v945 = vadd.f32 %v894, %v944
      %v946 = vpop.f32.mrf.mxu0
      %v947 = vpop.f32.mrf.mxu0
      %v948 = vpop.f32.mrf.mxu0
      %949 = vdwg.mxu0
      %vm950 = vcmp.gt.f32.partialorder %v945, 0.0
      %v951 = vmin.f32 %v945, 0.0
      %v952 = vmul.f32 %v951, 1.442695
      %v953 = vpow.pop %v952
      %v954 = vsub.f32 %v953, 1.0
      %v955 = vsel %vm950, %v945, %v954
      %s956 = scalar_lea.vmem [#allocation12], 48
      %v957 = vld [vmem:[%s956] sm:$0xf]
      %v958 = vld [vmem:[%s956 + $0x4] sm:$0xf]
      %v959 = vld [vmem:[%s956 + $0x8] sm:$0xf]
      %v960 = vld [vmem:[%s956 + $0xc] sm:$0xf]
      %v961 = vpack.c.bf16 %v955, %v955
      %v962 = vld [vmem:[%s7 + $0x5] sm:$0x1]
      %v963 = vlaneseq
      %v964 = vshrl.u32 %v963, 7
      %v965 = vsub.s32 0, %v964
      %v966 = vrot.slane %v962, %v965
      %v971 = vunpack.c.l.b16 %v957
      %v972 = vunpack.c.l.b16 %v958
      %v973 = vunpack.c.l.b16 %v959
      %v974 = vunpack.c.l.b16 %v960
      %v975 = vpack.c.b16 %v972, %v971
      %v976 = vpack.c.b16 %v974, %v973
      %v980 = vsel %vm268, %v961, 0
      %982 = vmatprep.subr.bf16.mxu0 0
      %983 = vmatpush1.bf16.msra.mxu0 0
      %984 = vmatprep.subr.bf16.mxu0 0
      %985 = vmatpush1.bf16.msra.mxu0 0
      %986 = vmatprep.subr.bf16.mxu0 0
      %987 = vmatpush1.bf16.msra.mxu0 0
      %988 = vmatprep.subr.bf16.mxu0 0
      %989 = vmatpush1.bf16.msra.mxu0 0
      %990 = vmatprep.subr.bf16.mxu0 0
      %991 = vmatpush1.bf16.msra.mxu0 0
      %992 = vmatprep.subr.bf16.mxu0 0
      %993 = vmatpush1.bf16.msra.mxu0 0
      %994 = vmatprep.subr.bf16.mxu0 0
      %995 = vmatpush1.bf16.msra.mxu0 %v976
      %996 = vmatprep.subr.bf16.mxu0 0
      %997 = vmatpush1.bf16.msra.mxu0 %v975
      %998 = vmatprep.subr.bf16.mxu0 0
      %999 = vmatpush2.bf16.msra.mxu0 0
      %1000 = vmatprep.subr.bf16.mxu0 0
      %1001 = vmatpush2.bf16.msra.mxu0 0
      %1002 = vmatprep.subr.bf16.mxu0 0
      %1003 = vmatpush2.bf16.msra.mxu0 0
      %1004 = vmatprep.subr.bf16.mxu0 0
      %1005 = vmatpush2.bf16.msra.mxu0 0
      %1006 = vmatprep.subr.bf16.mxu0 0
      %1007 = vmatpush2.bf16.msra.mxu0 0
      %1008 = vmatprep.subr.bf16.mxu0 0
      %1009 = vmatpush2.bf16.msra.mxu0 0
      %1010 = vmatprep.subr.bf16.mxu0 0
      %1011 = vmatpush2.bf16.msra.mxu0 0
      %1012 = vmatprep.subr.bf16.mxu0 0
      %1013 = vmatpush2.bf16.msra.mxu0 0
      %1014 = vmatprep.mubr.bf16.mxu0 0
      %1015 = vmatmul.mubr.bf16.gmra.mxu0 %v980
      %v1016 = vpop.f32.mrf.mxu0
      %v1017 = vadd.f32 %v966, %v1016
      %v1018 = vpop.f32.mrf.mxu0
      %v1019 = vpop.f32.mrf.mxu0
      %v1020 = vpop.f32.mrf.mxu0
      %1021 = vdwg.mxu0
      %vm1022 = vcmp.gt.f32.partialorder %v1017, 0.0
      %v1023 = vmin.f32 %v1017, 0.0
      %v1024 = vmul.f32 %v1023, 1.442695
      %v1025 = vpow.pop %v1024
      %v1026 = vsub.f32 %v1025, 1.0
      %v1027 = vsel %vm1022, %v1017, %v1026
      %s1028 = scalar_lea.vmem [#allocation12], 112
      %v1029 = vld [vmem:[%s1028] sm:$0xf]
      %v1030 = vld [vmem:[%s1028 + $0x4] sm:$0xf]
      %v1031 = vld [vmem:[%s1028 + $0x8] sm:$0xf]
      %v1032 = vld [vmem:[%s1028 + $0xc] sm:$0xf]
      %v1033 = vpack.c.bf16 %v1027, %v1027
      %v1038 = vunpack.c.l.b16 %v1029
      %v1039 = vunpack.c.l.b16 %v1030
      %v1040 = vunpack.c.l.b16 %v1031
      %v1041 = vunpack.c.l.b16 %v1032
      %v1042 = vpack.c.b16 %v1039, %v1038
      %v1043 = vpack.c.b16 %v1041, %v1040
      %1047 = vrot.lane.b32.xlu0 %v450, 64
      %v1048 = vpop.permute.xlu0 %1047
      %v1051 = vsel %vm268, %v1033, 0
      %1053 = vmatprep.subr.bf16.mxu0 0
      %1054 = vmatpush1.bf16.msra.mxu0 0
      %1055 = vmatprep.subr.bf16.mxu0 0
      %1056 = vmatpush1.bf16.msra.mxu0 0
      %1057 = vmatprep.subr.bf16.mxu0 0
      %1058 = vmatpush1.bf16.msra.mxu0 0
      %1059 = vmatprep.subr.bf16.mxu0 0
      %1060 = vmatpush1.bf16.msra.mxu0 0
      %1061 = vmatprep.subr.bf16.mxu0 0
      %1062 = vmatpush1.bf16.msra.mxu0 0
      %1063 = vmatprep.subr.bf16.mxu0 0
      %1064 = vmatpush1.bf16.msra.mxu0 0
      %1065 = vmatprep.subr.bf16.mxu0 0
      %1066 = vmatpush1.bf16.msra.mxu0 %v1043
      %1067 = vmatprep.subr.bf16.mxu0 0
      %1068 = vmatpush1.bf16.msra.mxu0 %v1042
      %1069 = vmatprep.subr.bf16.mxu0 0
      %1070 = vmatpush2.bf16.msra.mxu0 0
      %1071 = vmatprep.subr.bf16.mxu0 0
      %1072 = vmatpush2.bf16.msra.mxu0 0
      %1073 = vmatprep.subr.bf16.mxu0 0
      %1074 = vmatpush2.bf16.msra.mxu0 0
      %1075 = vmatprep.subr.bf16.mxu0 0
      %1076 = vmatpush2.bf16.msra.mxu0 0
      %1077 = vmatprep.subr.bf16.mxu0 0
      %1078 = vmatpush2.bf16.msra.mxu0 0
      %1079 = vmatprep.subr.bf16.mxu0 0
      %1080 = vmatpush2.bf16.msra.mxu0 0
      %1081 = vmatprep.subr.bf16.mxu0 0
      %1082 = vmatpush2.bf16.msra.mxu0 0
      %1083 = vmatprep.subr.bf16.mxu0 0
      %1084 = vmatpush2.bf16.msra.mxu0 0
      %1085 = vmatprep.mubr.bf16.mxu0 0
      %1086 = vmatmul.mubr.bf16.gmra.mxu0 %v1051
      %v1087 = vpop.f32.mrf.mxu0
      %v1088 = vadd.f32 %v1048, %v1087
      %v1089 = vpop.f32.mrf.mxu0
      %v1090 = vpop.f32.mrf.mxu0
      %v1091 = vpop.f32.mrf.mxu0
      %1092 = vdwg.mxu0
      %vm1093 = vcmp.gt.f32.partialorder %v1088, 0.0
      %v1094 = vmin.f32 %v1088, 0.0
      %v1095 = vmul.f32 %v1094, 1.442695
      %v1096 = vpow.pop %v1095
      %v1097 = vsub.f32 %v1096, 1.0
      %v1098 = vsel %vm1093, %v1088, %v1097
      %s1099 = scalar_lea.vmem [#allocation12], 128
      %v1100 = vld [vmem:[%s1099] sm:$0xf]
      %v1101 = vld [vmem:[%s1099 + $0x4] sm:$0xf]
      %v1102 = vld [vmem:[%s1099 + $0x8] sm:$0xf]
      %v1103 = vld [vmem:[%s1099 + $0xc] sm:$0xf]
      %v1104 = vpack.c.bf16 %v1098, %v1098
      %v1105 = vld [vmem:[%s7 + $0x8] sm:$0x1]
      %v1106 = vlaneseq
      %v1107 = vshrl.u32 %v1106, 7
      %v1108 = vsub.s32 0, %v1107
      %v1109 = vrot.slane %v1105, %v1108
      %v1114 = vunpack.c.l.b16 %v1100
      %v1115 = vunpack.c.l.b16 %v1101
      %v1116 = vunpack.c.l.b16 %v1102
      %v1117 = vunpack.c.l.b16 %v1103
      %v1118 = vpack.c.b16 %v1115, %v1114
      %v1119 = vpack.c.b16 %v1117, %v1116
      %v1123 = vsel %vm268, %v1104, 0
      %1125 = vmatprep.subr.bf16.mxu0 0
      %1126 = vmatpush1.bf16.msra.mxu0 0
      %1127 = vmatprep.subr.bf16.mxu0 0
      %1128 = vmatpush1.bf16.msra.mxu0 0
      %1129 = vmatprep.subr.bf16.mxu0 0
      %1130 = vmatpush1.bf16.msra.mxu0 0
      %1131 = vmatprep.subr.bf16.mxu0 0
      %1132 = vmatpush1.bf16.msra.mxu0 0
      %1133 = vmatprep.subr.bf16.mxu0 0
      %1134 = vmatpush1.bf16.msra.mxu0 0
      %1135 = vmatprep.subr.bf16.mxu0 0
      %1136 = vmatpush1.bf16.msra.mxu0 0
      %1137 = vmatprep.subr.bf16.mxu0 0
      %1138 = vmatpush1.bf16.msra.mxu0 %v1119
      %1139 = vmatprep.subr.bf16.mxu0 0
      %1140 = vmatpush1.bf16.msra.mxu0 %v1118
      %1141 = vmatprep.subr.bf16.mxu0 0
      %1142 = vmatpush2.bf16.msra.mxu0 0
      %1143 = vmatprep.subr.bf16.mxu0 0
      %1144 = vmatpush2.bf16.msra.mxu0 0
      %1145 = vmatprep.subr.bf16.mxu0 0
      %1146 = vmatpush2.bf16.msra.mxu0 0
      %1147 = vmatprep.subr.bf16.mxu0 0
      %1148 = vmatpush2.bf16.msra.mxu0 0
      %1149 = vmatprep.subr.bf16.mxu0 0
      %1150 = vmatpush2.bf16.msra.mxu0 0
      %1151 = vmatprep.subr.bf16.mxu0 0
      %1152 = vmatpush2.bf16.msra.mxu0 0
      %1153 = vmatprep.subr.bf16.mxu0 0
      %1154 = vmatpush2.bf16.msra.mxu0 0
      %1155 = vmatprep.subr.bf16.mxu0 0
      %1156 = vmatpush2.bf16.msra.mxu0 0
      %1157 = vmatprep.mubr.bf16.mxu0 0
      %1158 = vmatmul.mubr.bf16.gmra.mxu0 %v1123
      %v1159 = vpop.f32.mrf.mxu0
      %v1160 = vadd.f32 %v1109, %v1159
      %v1161 = vpop.f32.mrf.mxu0
      %v1162 = vpop.f32.mrf.mxu0
      %v1163 = vpop.f32.mrf.mxu0
      %1164 = vdwg.mxu0
      %vm1165 = vcmp.gt.f32.partialorder %v1160, 0.0
      %v1166 = vmin.f32 %v1160, 0.0
      %v1167 = vmul.f32 %v1166, 1.442695
      %v1168 = vpow.pop %v1167
      %v1169 = vsub.f32 %v1168, 1.0
      %v1170 = vsel %vm1165, %v1160, %v1169
      %s1171 = scalar_lea.vmem [#allocation12], 144
      %v1172 = vld [vmem:[%s1171] sm:$0xf]
      %v1173 = vld [vmem:[%s1171 + $0x4] sm:$0xf]
      %v1174 = vld [vmem:[%s1171 + $0x8] sm:$0xf]
      %v1175 = vld [vmem:[%s1171 + $0xc] sm:$0xf]
      %v1176 = vpack.c.bf16 %v1170, %v1170
      %v1177 = vld [vmem:[%s7 + $0x9] sm:$0x1]
      %v1178 = vlaneseq
      %v1179 = vshrl.u32 %v1178, 7
      %v1180 = vsub.s32 0, %v1179
      %v1181 = vrot.slane %v1177, %v1180
      %v1186 = vunpack.c.l.b16 %v1172
      %v1187 = vunpack.c.l.b16 %v1173
      %v1188 = vunpack.c.l.b16 %v1174
      %v1189 = vunpack.c.l.b16 %v1175
      %v1190 = vpack.c.b16 %v1187, %v1186
      %v1191 = vpack.c.b16 %v1189, %v1188
      %v1195 = vsel %vm268, %v1176, 0
      %1197 = vmatprep.subr.bf16.mxu0 0
      %1198 = vmatpush1.bf16.msra.mxu0 0
      %1199 = vmatprep.subr.bf16.mxu0 0
      %1200 = vmatpush1.bf16.msra.mxu0 0
      %1201 = vmatprep.subr.bf16.mxu0 0
      %1202 = vmatpush1.bf16.msra.mxu0 0
      %1203 = vmatprep.subr.bf16.mxu0 0
      %1204 = vmatpush1.bf16.msra.mxu0 0
      %1205 = vmatprep.subr.bf16.mxu0 0
      %1206 = vmatpush1.bf16.msra.mxu0 0
      %1207 = vmatprep.subr.bf16.mxu0 0
      %1208 = vmatpush1.bf16.msra.mxu0 0
      %1209 = vmatprep.subr.bf16.mxu0 0
      %1210 = vmatpush1.bf16.msra.mxu0 %v1191
      %1211 = vmatprep.subr.bf16.mxu0 0
      %1212 = vmatpush1.bf16.msra.mxu0 %v1190
      %1213 = vmatprep.subr.bf16.mxu0 0
      %1214 = vmatpush2.bf16.msra.mxu0 0
      %1215 = vmatprep.subr.bf16.mxu0 0
      %1216 = vmatpush2.bf16.msra.mxu0 0
      %1217 = vmatprep.subr.bf16.mxu0 0
      %1218 = vmatpush2.bf16.msra.mxu0 0
      %1219 = vmatprep.subr.bf16.mxu0 0
      %1220 = vmatpush2.bf16.msra.mxu0 0
      %1221 = vmatprep.subr.bf16.mxu0 0
      %1222 = vmatpush2.bf16.msra.mxu0 0
      %1223 = vmatprep.subr.bf16.mxu0 0
      %1224 = vmatpush2.bf16.msra.mxu0 0
      %1225 = vmatprep.subr.bf16.mxu0 0
      %1226 = vmatpush2.bf16.msra.mxu0 0
      %1227 = vmatprep.subr.bf16.mxu0 0
      %1228 = vmatpush2.bf16.msra.mxu0 0
      %1229 = vmatprep.mubr.bf16.mxu0 0
      %1230 = vmatmul.mubr.bf16.gmra.mxu0 %v1195
      %v1231 = vpop.f32.mrf.mxu0
      %v1232 = vadd.f32 %v1181, %v1231
      %v1233 = vpop.f32.mrf.mxu0
      %v1234 = vpop.f32.mrf.mxu0
      %v1235 = vpop.f32.mrf.mxu0
      %1236 = vdwg.mxu0
      %vm1237 = vcmp.gt.f32.partialorder %v1232, 0.0
      %v1238 = vmin.f32 %v1232, 0.0
      %v1239 = vmul.f32 %v1238, 1.442695
      %v1240 = vpow.pop %v1239
      %v1241 = vsub.f32 %v1240, 1.0
      %v1242 = vsel %vm1237, %v1232, %v1241
      %v1243 = vld [vmem:[%s11] sm:$0xf]
      %v1244 = vld [vmem:[%s11 + $0x4] sm:$0xf]
      %v1245 = vld [vmem:[%s11 + $0x8] sm:$0xf]
      %v1246 = vld [vmem:[%s11 + $0xc] sm:$0xf]
      %v1247 = vpack.c.bf16 %v1242, %v1242
      %v1248 = vld [vmem:[%s12] sm:$0x1]
      %v1250 = vlaneseq
      %v1251 = vshrl.u32 %v1250, 7
      %v1252 = vsub.s32 0, %v1251
      %v1253 = vrot.slane %v1248, %v1252
      %v1259 = vunpack.c.l.b16 %v1243
      %v1260 = vunpack.c.l.b16 %v1244
      %v1261 = vunpack.c.l.b16 %v1245
      %v1262 = vunpack.c.l.b16 %v1246
      %v1263 = vpack.c.b16 %v1260, %v1259
      %v1264 = vpack.c.b16 %v1262, %v1261
      %v1268 = vsel %vm268, %v1247, 0
      %1270 = vmatprep.subr.bf16.mxu0 0
      %1271 = vmatpush1.bf16.msra.mxu0 0
      %1272 = vmatprep.subr.bf16.mxu0 0
      %1273 = vmatpush1.bf16.msra.mxu0 0
      %1274 = vmatprep.subr.bf16.mxu0 0
      %1275 = vmatpush1.bf16.msra.mxu0 0
      %1276 = vmatprep.subr.bf16.mxu0 0
      %1277 = vmatpush1.bf16.msra.mxu0 0
      %1278 = vmatprep.subr.bf16.mxu0 0
      %1279 = vmatpush1.bf16.msra.mxu0 0
      %1280 = vmatprep.subr.bf16.mxu0 0
      %1281 = vmatpush1.bf16.msra.mxu0 0
      %1282 = vmatprep.subr.bf16.mxu0 0
      %1283 = vmatpush1.bf16.msra.mxu0 %v1264
      %1284 = vmatprep.subr.bf16.mxu0 0
      %1285 = vmatpush1.bf16.msra.mxu0 %v1263
      %1286 = vmatprep.subr.bf16.mxu0 0
      %1287 = vmatpush2.bf16.msra.mxu0 0
      %1288 = vmatprep.subr.bf16.mxu0 0
      %1289 = vmatpush2.bf16.msra.mxu0 0
      %1290 = vmatprep.subr.bf16.mxu0 0
      %1291 = vmatpush2.bf16.msra.mxu0 0
      %1292 = vmatprep.subr.bf16.mxu0 0
      %1293 = vmatpush2.bf16.msra.mxu0 0
      %1294 = vmatprep.subr.bf16.mxu0 0
      %1295 = vmatpush2.bf16.msra.mxu0 0
      %1296 = vmatprep.subr.bf16.mxu0 0
      %1297 = vmatpush2.bf16.msra.mxu0 0
      %1298 = vmatprep.subr.bf16.mxu0 0
      %1299 = vmatpush2.bf16.msra.mxu0 0
      %1300 = vmatprep.subr.bf16.mxu0 0
      %1301 = vmatpush2.bf16.msra.mxu0 0
      %1302 = vmatprep.mubr.bf16.mxu0 0
      %1303 = vmatmul.mubr.bf16.gmra.mxu0 %v1268
      %v1304 = vpop.f32.mrf.mxu0
      %v1305 = vadd.f32 %v1253, %v1304
      %v1306 = vpop.f32.mrf.mxu0
      %v1307 = vpop.f32.mrf.mxu0
      %v1308 = vpop.f32.mrf.mxu0
      %1309 = vdwg.mxu0
      %s1310 = scalar_lea.vmem %s6, 32
      %v1311 = vld [vmem:[%s1310] sm:$0xf]
      %v1312 = vld [vmem:[%s1310 + $0x4] sm:$0xf]
      %v1313 = vld [vmem:[%s1310 + $0x8] sm:$0xf]
      %v1314 = vld [vmem:[%s1310 + $0xc] sm:$0xf]
      %v1315 = vld [vmem:[#allocation13 + $0x1] sm:$0x1]
      %v1316 = vlaneseq
      %v1317 = vshrl.u32 %v1316, 7
      %v1318 = vsub.s32 0, %v1317
      %v1319 = vrot.slane %v1315, %v1318
      %v1324 = vunpack.c.l.b16 %v1311
      %v1325 = vunpack.c.l.b16 %v1312
      %v1326 = vunpack.c.l.b16 %v1313
      %v1327 = vunpack.c.l.b16 %v1314
      %v1328 = vpack.c.b16 %v1325, %v1324
      %v1329 = vpack.c.b16 %v1327, %v1326
      %1332 = vmatprep.subr.bf16.mxu0 0
      %1333 = vmatpush1.bf16.msra.mxu0 0
      %1334 = vmatprep.subr.bf16.mxu0 0
      %1335 = vmatpush1.bf16.msra.mxu0 0
      %1336 = vmatprep.subr.bf16.mxu0 0
      %1337 = vmatpush1.bf16.msra.mxu0 0
      %1338 = vmatprep.subr.bf16.mxu0 0
      %1339 = vmatpush1.bf16.msra.mxu0 0
      %1340 = vmatprep.subr.bf16.mxu0 0
      %1341 = vmatpush1.bf16.msra.mxu0 0
      %1342 = vmatprep.subr.bf16.mxu0 0
      %1343 = vmatpush1.bf16.msra.mxu0 0
      %1344 = vmatprep.subr.bf16.mxu0 0
      %1345 = vmatpush1.bf16.msra.mxu0 %v1329
      %1346 = vmatprep.subr.bf16.mxu0 0
      %1347 = vmatpush1.bf16.msra.mxu0 %v1328
      %1348 = vmatprep.subr.bf16.mxu0 0
      %1349 = vmatpush2.bf16.msra.mxu0 0
      %1350 = vmatprep.subr.bf16.mxu0 0
      %1351 = vmatpush2.bf16.msra.mxu0 0
      %1352 = vmatprep.subr.bf16.mxu0 0
      %1353 = vmatpush2.bf16.msra.mxu0 0
      %1354 = vmatprep.subr.bf16.mxu0 0
      %1355 = vmatpush2.bf16.msra.mxu0 0
      %1356 = vmatprep.subr.bf16.mxu0 0
      %1357 = vmatpush2.bf16.msra.mxu0 0
      %1358 = vmatprep.subr.bf16.mxu0 0
      %1359 = vmatpush2.bf16.msra.mxu0 0
      %1360 = vmatprep.subr.bf16.mxu0 0
      %1361 = vmatpush2.bf16.msra.mxu0 0
      %1362 = vmatprep.subr.bf16.mxu0 0
      %1363 = vmatpush2.bf16.msra.mxu0 0
      %1364 = vmatprep.mubr.bf16.mxu0 0
      %1365 = vmatmul.mubr.bf16.gmra.mxu0 %v1051
      %v1366 = vpop.f32.mrf.mxu0
      %v1367 = vadd.f32 %v1319, %v1366
      %v1368 = vpop.f32.mrf.mxu0
      %v1369 = vpop.f32.mrf.mxu0
      %v1370 = vpop.f32.mrf.mxu0
      %1371 = vdwg.mxu0
      %s1372 = scalar_lea.vmem %s6, 16
      %v1373 = vld [vmem:[%s1372] sm:$0xf]
      %v1374 = vld [vmem:[%s1372 + $0x4] sm:$0xf]
      %v1375 = vld [vmem:[%s1372 + $0x8] sm:$0xf]
      %v1376 = vld [vmem:[%s1372 + $0xc] sm:$0xf]
      %v1381 = vunpack.c.l.b16 %v1373
      %v1382 = vunpack.c.l.b16 %v1374
      %v1383 = vunpack.c.l.b16 %v1375
      %v1384 = vunpack.c.l.b16 %v1376
      %v1385 = vpack.c.b16 %v1382, %v1381
      %v1386 = vpack.c.b16 %v1384, %v1383
      %1389 = vmatprep.subr.bf16.mxu0 0
      %1390 = vmatpush1.bf16.msra.mxu0 0
      %1391 = vmatprep.subr.bf16.mxu0 0
      %1392 = vmatpush1.bf16.msra.mxu0 0
      %1393 = vmatprep.subr.bf16.mxu0 0
      %1394 = vmatpush1.bf16.msra.mxu0 0
      %1395 = vmatprep.subr.bf16.mxu0 0
      %1396 = vmatpush1.bf16.msra.mxu0 0
      %1397 = vmatprep.subr.bf16.mxu0 0
      %1398 = vmatpush1.bf16.msra.mxu0 0
      %1399 = vmatprep.subr.bf16.mxu0 0
      %1400 = vmatpush1.bf16.msra.mxu0 0
      %1401 = vmatprep.subr.bf16.mxu0 0
      %1402 = vmatpush1.bf16.msra.mxu0 %v1386
      %1403 = vmatprep.subr.bf16.mxu0 0
      %1404 = vmatpush1.bf16.msra.mxu0 %v1385
      %1405 = vmatprep.subr.bf16.mxu0 0
      %1406 = vmatpush2.bf16.msra.mxu0 0
      %1407 = vmatprep.subr.bf16.mxu0 0
      %1408 = vmatpush2.bf16.msra.mxu0 0
      %1409 = vmatprep.subr.bf16.mxu0 0
      %1410 = vmatpush2.bf16.msra.mxu0 0
      %1411 = vmatprep.subr.bf16.mxu0 0
      %1412 = vmatpush2.bf16.msra.mxu0 0
      %1413 = vmatprep.subr.bf16.mxu0 0
      %1414 = vmatpush2.bf16.msra.mxu0 0
      %1415 = vmatprep.subr.bf16.mxu0 0
      %1416 = vmatpush2.bf16.msra.mxu0 0
      %1417 = vmatprep.subr.bf16.mxu0 0
      %1418 = vmatpush2.bf16.msra.mxu0 0
      %1419 = vmatprep.subr.bf16.mxu0 0
      %1420 = vmatpush2.bf16.msra.mxu0 0
      %1421 = vmatprep.mubr.bf16.mxu0 0
      %1422 = vmatmul.mubr.bf16.gmra.mxu0 %v474
      %v1423 = vpop.f32.mrf.mxu0
      %v1424 = vadd.f32 %v1367, %v1423
      %v1425 = vpop.f32.mrf.mxu0
      %v1426 = vpop.f32.mrf.mxu0
      %v1427 = vpop.f32.mrf.mxu0
      %1428 = vdwg.mxu0
      %s1429 = scalar_lea.vmem %s6, 48
      %v1430 = vld [vmem:[%s1429] sm:$0xf]
      %v1431 = vld [vmem:[%s1429 + $0x4] sm:$0xf]
      %v1432 = vld [vmem:[%s1429 + $0x8] sm:$0xf]
      %v1433 = vld [vmem:[%s1429 + $0xc] sm:$0xf]
      %v1434 = vld [vmem:[#allocation13 + $0x2] sm:$0x1]
      %v1435 = vlaneseq
      %v1436 = vshrl.u32 %v1435, 7
      %v1437 = vsub.s32 0, %v1436
      %v1438 = vrot.slane %v1434, %v1437
      %v1443 = vunpack.c.l.b16 %v1430
      %v1444 = vunpack.c.l.b16 %v1431
      %v1445 = vunpack.c.l.b16 %v1432
      %v1446 = vunpack.c.l.b16 %v1433
      %v1447 = vpack.c.b16 %v1444, %v1443
      %v1448 = vpack.c.b16 %v1446, %v1445
      %1451 = vmatprep.subr.bf16.mxu0 0
      %1452 = vmatpush1.bf16.msra.mxu0 0
      %1453 = vmatprep.subr.bf16.mxu0 0
      %1454 = vmatpush1.bf16.msra.mxu0 0
      %1455 = vmatprep.subr.bf16.mxu0 0
      %1456 = vmatpush1.bf16.msra.mxu0 0
      %1457 = vmatprep.subr.bf16.mxu0 0
      %1458 = vmatpush1.bf16.msra.mxu0 0
      %1459 = vmatprep.subr.bf16.mxu0 0
      %1460 = vmatpush1.bf16.msra.mxu0 0
      %1461 = vmatprep.subr.bf16.mxu0 0
      %1462 = vmatpush1.bf16.msra.mxu0 0
      %1463 = vmatprep.subr.bf16.mxu0 0
      %1464 = vmatpush1.bf16.msra.mxu0 %v1448
      %1465 = vmatprep.subr.bf16.mxu0 0
      %1466 = vmatpush1.bf16.msra.mxu0 %v1447
      %1467 = vmatprep.subr.bf16.mxu0 0
      %1468 = vmatpush2.bf16.msra.mxu0 0
      %1469 = vmatprep.subr.bf16.mxu0 0
      %1470 = vmatpush2.bf16.msra.mxu0 0
      %1471 = vmatprep.subr.bf16.mxu0 0
      %1472 = vmatpush2.bf16.msra.mxu0 0
      %1473 = vmatprep.subr.bf16.mxu0 0
      %1474 = vmatpush2.bf16.msra.mxu0 0
      %1475 = vmatprep.subr.bf16.mxu0 0
      %1476 = vmatpush2.bf16.msra.mxu0 0
      %1477 = vmatprep.subr.bf16.mxu0 0
      %1478 = vmatpush2.bf16.msra.mxu0 0
      %1479 = vmatprep.subr.bf16.mxu0 0
      %1480 = vmatpush2.bf16.msra.mxu0 0
      %1481 = vmatprep.subr.bf16.mxu0 0
      %1482 = vmatpush2.bf16.msra.mxu0 0
      %1483 = vmatprep.mubr.bf16.mxu0 0
      %1484 = vmatmul.mubr.bf16.gmra.mxu0 %v413
      %v1485 = vpop.f32.mrf.mxu0
      %v1486 = vadd.f32 %v1438, %v1485
      %v1487 = vpop.f32.mrf.mxu0
      %v1488 = vpop.f32.mrf.mxu0
      %v1489 = vpop.f32.mrf.mxu0
      %1490 = vdwg.mxu0
      %v1491 = vadd.f32 %v1424, %v1486
      %v1492 = vsub.f32 0.0, %v1491
      %v1493 = vmul.f32 %v1492, 1.442695
      %v1494 = vpow.pop %v1493
      %v1495 = vadd.f32 %v1494, 1.0
      %v1496 = vrcp.pop %v1495
      %v1497 = vmul.f32 1.0, %v1496
      %1499 = vrot.lane.b32.xlu0 %v1486, 64
      %v1500 = vpop.permute.xlu0 %1499
      %v1502 = vmul.f32 %v1497, %v1500
      %1504 = vrot.lane.b32.xlu0 %v1502, 64
      %v1505 = vpop.permute.xlu0 %1504
      %v1507 = vadd.f32 %v1424, %v1505
      %v1508 = vtanh.pop %v1507
      %v1509 = vsub.f32 1.0, %v1497
      %1511 = vrot.lane.b32.xlu0 %v1508, 96
      %v1512 = vpop.permute.xlu0 %1511
      %v1514 = vmul.f32 %v1509, %v1512
      %1516 = vrot.lane.b32.xlu0 %v152, 32
      %v1517 = vpop.permute.xlu0 %1516
      %v1519 = vmul.f32 %v1497, %v1517
      %v1520 = vadd.f32 %v1514, %v1519
      %v1521 = vmax.f32 %v664, 0.001
      %v1522 = vlog2.pop %v1521
      %v1523 = vmul.f32 %v1522, 0.6931472
      %v1524 = vmax.f32 %v817, 0.001
      %v1525 = vlog2.pop %v1524
      %v1526 = vmul.f32 %v1525, 0.6931472
      %v1527 = vsub.f32 %v1523, %v1526
      %v1528 = vmul.f32 %v664, %v1527
      %v1529 = vsub.f32 1.0, %v664
      %v1530 = vmax.f32 %v1529, 0.001
      %v1531 = vlog2.pop %v1530
      %v1532 = vmul.f32 %v1531, 0.6931472
      %v1533 = vsub.f32 1.0, %v817
      %v1534 = vmax.f32 %v1533, 0.001
      %v1535 = vlog2.pop %v1534
      %v1536 = vmul.f32 %v1535, 0.6931472
      %v1537 = vsub.f32 %v1532, %v1536
      %v1538 = vmul.f32 %v1529, %v1537
      %v1539 = vadd.f32 %v1528, %v1538
      %vm1540 = vcmask 125952
      %v1541 = vsel %vm1540, %v1539, 0.0
      %1542 = vadd.xlane.f32.xlu0 %v1541
      %v1543 = vpop.xlane.xlu0 %1542
      %v1544 = vsel %vm196, %v1543, 0.0
      %v1545 = vrot.slane %v1544, 4
      %v1546 = vadd.f32 %v1544, %v1545
      %v1547 = vrot.slane %v1546, 2
      %v1548 = vadd.f32 %v1546, %v1547
      %v1549 = vrot.slane %v1548, 1
      %v1550 = vadd.f32 %v1548, %v1549
      %v1551 = vmul.f32 %v1550, 0.25
      %s1552 = scalar_lea.vmem [#allocation15], %s154
      %vm1553 = vcmask 191488
      %1554 = vst.msk [vmem:[%s1552] sm:$0xf] %vm1553, %v1305
      %v1555 = vadd.f32 %v153, %v1551
      %1557 = vrot.lane.b32.xlu0 %v1520, 96
      %v1558 = vpop.permute.xlu0 %1557
    $region94: #{tpu_custom_call.1} parent=1 // loop_footer
      %s151 = sadd.s32 1, %s147
    $region95: #{tpu_custom_call.1} parent=1 // loop_footer_branch
      %146 = sbr.rel target = $region91
    $region96: #{tpu_custom_call.1} parent=1 // loop_exit
      _
    %vm1560 = vcmask 257024
    %1561 = vst.msk [vmem:[#allocation2] sm:$0xf] %vm1560, %v152
    %1562 = vst.msk [vmem:[#allocation3] sm:$0xf] %vm1560, %v145
    %v1563 = vld [vmem:[#allocation16] sm:$0x1]
    %v1564 = vadd.f32 %v1563, %v153
    %vm1565 = vcmask 0
    %1566 = vst.msk [vmem:[#allocation16] sm:$0x1] %vm1565, %v1564
    // Predicated region
    $region97: #{tpu_custom_call.1} parent=1 // pred_check
      %p1567 = pneg %p135
    $region98: #{tpu_custom_call.1} parent=1 // pred_check_branch
      %1569 = sbr.rel (%p1567) target = $region100
    $region99: #{tpu_custom_call.1} parent=1 // pred_region
      %v1570 = vld [vmem:[#allocation16] sm:$0x1]
      %v1571 = vmul.f32 %v1570, 0.125
      %1572 = vst.msk [vmem:[#allocation16] sm:$0x1] %vm1565, %v1571
    $region100: #{tpu_custom_call.1} parent=1 // pred_fallthru
      _
    // Predicated region
    $region101: #{tpu_custom_call.1} parent=1 // pred_check
      _
    $region102: #{tpu_custom_call.1} parent=1 // pred_check_branch
      %1574 = sbr.rel (0) target = $region104
    $region103: #{tpu_custom_call.1} parent=1 // pred_region
      %s1576 = ssub.s32 512, 512
      %1577 = vsyncadd [#allocation6], %s1576
      %s1578 = sshll.u32 [#allocation15], 4
      %s1579 = int_to_ptr.vmem [resolvable:$true] %s1578
      %1584 = dma.vmem_to_hbm [thread:$0]  %s1579, 512, %s15, [#allocation6], 64, 64, 4
    $region104: #{tpu_custom_call.1} parent=1 // pred_fallthru
      _
    // Predicated region
    $region105: #{tpu_custom_call.1} parent=1 // pred_check
      _
    $region106: #{tpu_custom_call.1} parent=1 // pred_check_branch
      %1586 = sbr.rel (0) target = $region108
    $region107: #{tpu_custom_call.1} parent=1 // pred_region
      %s1588 = ssub.s32 16, 16
      %1589 = vsyncadd [#allocation17], %s1588
      %s1591 = sshll.u32 [#allocation16], 4
      %s1592 = int_to_ptr.vmem [resolvable:$true] %s1591
      %1594 = dma.vmem_to_hbm [thread:$0]  %s1592, 16, %s16, [#allocation17]
    $region108: #{tpu_custom_call.1} parent=1 // pred_fallthru
      _
    // Predicated region
    $region109: #{tpu_custom_call.1} parent=1 // pred_check
      _
    $region110: #{tpu_custom_call.1} parent=1 // pred_check_branch
      %1596 = sbr.rel (0) target = $region112
    $region111: #{tpu_custom_call.1} parent=1 // pred_region
      %1597 = dma.done [#allocation6], 512
    $region112: #{tpu_custom_call.1} parent=1 // pred_fallthru
      _
    // Predicated region
    $region113: #{tpu_custom_call.1} parent=1 // pred_check
      _
    $region114: #{tpu_custom_call.1} parent=1 // pred_check_branch
      %1599 = sbr.rel (0) target = $region116
    $region115: #{tpu_custom_call.1} parent=1 // pred_region
      %1600 = dma.done [#allocation17], 16
    $region116: #{tpu_custom_call.1} parent=1 // pred_fallthru
      _
    %1601 = vsyncpa [#allocation5], 1
    %1602 = vsyncpa [#allocation8], 1
    %1603 = vsyncpa [#allocation11], 1
    %1604 = vsyncpa [#allocation14], 1
    %1605 = vsyncpa [#allocation6], 1
    %1606 = vsyncpa [#allocation17], 1

</llo_original>
